<compile_context>
chip_gen: v6e
topology: v6e:2x2x1
jax: 0.10.0
libtpu: 0.0.40
codegen_flags: <defaults>
</compile_context>

<pallas_src>
import functools
import math

import jax
import jax.numpy as jnp
from jax.experimental import pallas as pl
from jax.experimental.pallas import tpu as pltpu


def _round_up(n, m):
    return ((n + m - 1) // m) * m


def _pick_tiles(N):
    """Row/column tile sizes for the attention grid.

    Row tile tq: power-of-two multiple of 128, large (<=512) to amortize the
    per-grid-step pipeline overhead, but small enough that there are >= 2 row
    tiles whenever the graph allows it (v7x megacore sharding of the
    "parallel" row axis).  Column (reduction) tile tk: multiple of 256 so the
    e@h contraction fills the 256-deep MXU on v6e/v7x, capped at 1024 so the
    double-buffered int8 adjacency block stays small vs. v7x's 64 MiB VMEM.
    """
    n128 = _round_up(max(N, 1), 128)
    half = n128 // 2
    tq = 128
    while tq * 2 <= min(half, 512):
        tq *= 2
    tk = max(256, min(1024, tq * 2))
    return tq, tk


# --------------------------------------------------------------------------
# Kernel 1 (streaming path prologue, row-tiled):
#   h   = x @ W                     (bf16 value tiles to HBM)
#   f1  = x @ (W @ a1)              (query-side score term, (tq, 1))
#   f2t = sum_k (W @ a2)[k] * x^T   (key-side score term, lane-major (1, tq))
# --------------------------------------------------------------------------
def _proj_kernel(x_ref, xt_ref, w_ref, wa1_ref, wa2_ref, h_ref, f1_ref, f2t_ref):
    x = x_ref[...]
    h = jnp.dot(x, w_ref[...], preferred_element_type=jnp.float32)
    h_ref[...] = h.astype(h_ref.dtype)
    f1_ref[...] = jnp.dot(x, wa1_ref[...], preferred_element_type=jnp.float32)
    # (in_feat, 1) * (in_feat, tq) -> reduce sublanes -> (1, tq), lane-major,
    # so no relayout is needed between the two pallas_calls.
    f2t_ref[...] = jnp.sum(wa2_ref[...] * xt_ref[...], axis=0, keepdims=True)


# --------------------------------------------------------------------------
# Kernel 2 (streaming path): masked attention + aggregation, flash-style
# online accumulation directly into the resident output block.
# --------------------------------------------------------------------------
def _attn_kernel(f1_ref, f2t_ref, adj_ref, h_ref, out_ref, rowsum_acc,
                 *, alpha, tk, h_resident):
    ki = pl.program_id(1)

    @pl.when(ki == 0)
    def _init():
        rowsum_acc[...] = jnp.zeros_like(rowsum_acc)
        out_ref[...] = jnp.zeros_like(out_ref)

    col = pl.multiple_of(ki * tk, tk)
    f2 = f2t_ref[:, pl.ds(col, tk)]                       # (1, tk), resident
    if h_resident:
        hk = h_ref[pl.ds(col, tk), :]                     # (tk, Fp), resident
    else:
        hk = h_ref[...]                                   # (tk, Fp), streamed

    # scores s_ij = f1[i] + f2[j];  -LeakyReLU(s) = min(-s, -alpha*s)
    s = f1_ref[...] + f2                                  # (tq, tk) f32
    adjf = adj_ref[...].astype(jnp.float32)               # {0,1}
    # exp then mask-multiply (non-edges exactly 0).  exp only overflows for
    # |s| > ~88/alpha, in which case the PyTorch module would hit its NaN
    # assert anyway.
    e = jnp.exp(jnp.minimum(-s, (-alpha) * s)) * adjf     # (tq, tk) f32

    rowsum_acc[...] += jnp.sum(e, axis=1, keepdims=True)
    # aggregation matmul on the MXU: bf16 operands, f32 accumulate into the
    # resident output block (no separate hp accumulator scratch).
    out_ref[...] += jnp.dot(e.astype(jnp.bfloat16), hk,
                            preferred_element_type=jnp.float32)

    @pl.when(ki == pl.num_programs(1) - 1)
    def _finalize():
        # rowsum > 0 whenever a node has at least one edge; the clamp only
        # guards padded / isolated rows (PyTorch would NaN-assert on those).
        inv = pl.reciprocal(jnp.maximum(rowsum_acc[...], 1e-30), approx=True)
        hp = out_ref[...] * inv
        out_ref[...] = jnp.where(hp > 0.0, hp, jnp.exp(hp) - 1.0)   # ELU


# --------------------------------------------------------------------------
# Fused single kernel for small graphs: projections kept in VMEM scratch,
# no bf16-h HBM round trip and no second kernel launch.
# --------------------------------------------------------------------------
def _fused_kernel(x_ref, xt_ref, w_ref, wa1_ref, wa2_ref, adj_ref, out_ref,
                  h_sc, f1_sc, f2t_sc, rowsum_acc, *, alpha, tq, tk):
    qi = pl.program_id(0)
    ki = pl.program_id(1)

    @pl.when(ki == 0)
    def _init():
        # Recomputed at the first column tile of every row tile: cheap for the
        # small graphs this path is gated to, and megacore-safe (each core has
        # its own scratch).
        x = x_ref[...]
        h = jnp.dot(x, w_ref[...], preferred_element_type=jnp.float32)
        h_sc[...] = h.astype(h_sc.dtype)
        f1_sc[...] = jnp.dot(x, wa1_ref[...], preferred_element_type=jnp.float32)
        f2t_sc[...] = jnp.sum(wa2_ref[...] * xt_ref[...], axis=0, keepdims=True)
        rowsum_acc[...] = jnp.zeros_like(rowsum_acc)
        out_ref[...] = jnp.zeros_like(out_ref)

    row = pl.multiple_of(qi * tq, tq)
    col = pl.multiple_of(ki * tk, tk)
    f1 = f1_sc[pl.ds(row, tq), :]                          # (tq, 1)
    f2 = f2t_sc[:, pl.ds(col, tk)]                         # (1, tk)
    hk = h_sc[pl.ds(col, tk), :]                           # (tk, Fp) bf16

    s = f1 + f2
    adjf = adj_ref[...].astype(jnp.float32)
    e = jnp.exp(jnp.minimum(-s, (-alpha) * s)) * adjf

    rowsum_acc[...] += jnp.sum(e, axis=1, keepdims=True)
    out_ref[...] += jnp.dot(e.astype(jnp.bfloat16), hk,
                            preferred_element_type=jnp.float32)

    @pl.when(ki == pl.num_programs(1) - 1)
    def _finalize():
        inv = pl.reciprocal(jnp.maximum(rowsum_acc[...], 1e-30), approx=True)
        hp = out_ref[...] * inv
        out_ref[...] = jnp.where(hp > 0.0, hp, jnp.exp(hp) - 1.0)   # ELU


# --------------------------------------------------------------------------
# Wrapper
# --------------------------------------------------------------------------
def sp_attention_forward(x, W, a, adj, *, alpha, tq=None, tk=None, fused=None):
    """x: [N, in_feat], W: [in_feat, F], a: [1, 2F], adj: [N, N] (nonzero = edge)."""
    N, in_feat = x.shape
    out_feat = W.shape[1]
    f_pad = _round_up(out_feat, 128)                      # lane-dense features

    if tq is None or tk is None:
        tq_d, tk_d = _pick_tiles(N)
        tq = tq if tq is not None else tq_d
        tk = tk if tk is not None else tk_d
    g = tq * tk // math.gcd(tq, tk)
    n_pad = _round_up(N, g)
    assert n_pad % tq == 0 and n_pad % tk == 0
    grid_rows = n_pad // tq
    grid_cols = n_pad // tk

    if fused is None:
        # Fused single-kernel path only when x / h / f1 / f2 comfortably fit
        # in VMEM scratch (stays well inside v7x's 64 MiB).
        fused = (n_pad <= 1024
                 and n_pad * in_feat * 4 <= (1 << 21)
                 and n_pad * f_pad <= (1 << 19))

    # ---- operand prep (cheap XLA ops) ----
    xf = x.astype(jnp.float32)
    x_p = jnp.zeros((n_pad, in_feat), jnp.float32).at[:N].set(xf)
    x_t = x_p.T                                           # (in_feat, n_pad)
    w_p = jnp.zeros((in_feat, f_pad), jnp.float32).at[:, :out_feat].set(
        W.astype(jnp.float32))
    a_f = a.astype(jnp.float32)
    Wf = W.astype(jnp.float32)
    # Fold a into W: h@a1 == x@(W@a1) exactly (associativity); keeps the score
    # projections tiny and lets f2t be produced lane-major in-kernel.
    wa1 = (Wf @ a_f[0, :out_feat]).reshape(in_feat, 1)
    wa2 = (Wf @ a_f[0, out_feat:]).reshape(in_feat, 1)
    # int8 adjacency mask: 4x less HBM traffic / VMEM than an f32 mask.
    adj_i8 = jnp.zeros((n_pad, n_pad), jnp.int8).at[:N, :N].set(
        (adj != 0).astype(jnp.int8))

    flops = 2 * n_pad * n_pad * f_pad + 10 * n_pad * n_pad
    transc = n_pad * n_pad
    bytes_acc = (n_pad * n_pad                 # adj int8
                 + n_pad * f_pad * 2           # h (bf16)
                 + n_pad * f_pad * 4           # out (f32)
                 + n_pad * in_feat * 8)

    if fused:
        est = (2 * tq * tk                                   # adj blocks
               + 4 * n_pad * in_feat * 4                     # x, x_t
               + 2 * in_feat * f_pad * 4                     # W
               + n_pad * f_pad * 2 + 2 * n_pad * 4           # h/f1/f2t scratch
               + 2 * tq * f_pad * 4 + tq * 4                 # out block, rowsum
               + 4 * tq * tk * 4)                            # body intermediates
        vmem_limit = int(min(64 << 20, max(32 << 20, 2 * est)))

        out_p = pl.pallas_call(
            functools.partial(_fused_kernel, alpha=float(alpha), tq=tq, tk=tk),
            out_shape=jax.ShapeDtypeStruct((n_pad, f_pad), jnp.float32),
            grid_spec=pltpu.PrefetchScalarGridSpec(
                num_scalar_prefetch=0,
                grid=(grid_rows, grid_cols),
                in_specs=[pl.BlockSpec((n_pad, in_feat), lambda qi, ki: (0, 0)),
                          pl.BlockSpec((in_feat, n_pad), lambda qi, ki: (0, 0)),
                          pl.BlockSpec((in_feat, f_pad), lambda qi, ki: (0, 0)),
                          pl.BlockSpec((in_feat, 1), lambda qi, ki: (0, 0)),
                          pl.BlockSpec((in_feat, 1), lambda qi, ki: (0, 0)),
                          pl.BlockSpec((tq, tk), lambda qi, ki: (qi, ki))],
                out_specs=pl.BlockSpec((tq, f_pad), lambda qi, ki: (qi, 0)),
                scratch_shapes=[pltpu.VMEM((n_pad, f_pad), jnp.bfloat16),
                                pltpu.VMEM((n_pad, 1), jnp.float32),
                                pltpu.VMEM((1, n_pad), jnp.float32),
                                pltpu.VMEM((tq, 1), jnp.float32)]),
            compiler_params=pltpu.CompilerParams(
                dimension_semantics=("parallel", "arbitrary"),
                vmem_limit_bytes=vmem_limit),
            cost_estimate=pl.CostEstimate(flops=int(flops),
                                          transcendentals=int(transc),
                                          bytes_accessed=int(bytes_acc)),
        )(x_p, x_t, w_p, wa1, wa2, adj_i8)
        return out_p[:N, :out_feat]

    # ---- kernel 1: projections (row-tiled) ----
    h, f1, f2t = pl.pallas_call(
        _proj_kernel,
        out_shape=(jax.ShapeDtypeStruct((n_pad, f_pad), jnp.bfloat16),
                   jax.ShapeDtypeStruct((n_pad, 1), jnp.float32),
                   jax.ShapeDtypeStruct((1, n_pad), jnp.float32)),
        grid_spec=pltpu.PrefetchScalarGridSpec(
            num_scalar_prefetch=0,
            grid=(grid_rows,),
            in_specs=[pl.BlockSpec((tq, in_feat), lambda i: (i, 0)),
                      pl.BlockSpec((in_feat, tq), lambda i: (0, i)),
                      pl.BlockSpec((in_feat, f_pad), lambda i: (0, 0)),
                      pl.BlockSpec((in_feat, 1), lambda i: (0, 0)),
                      pl.BlockSpec((in_feat, 1), lambda i: (0, 0))],
            out_specs=[pl.BlockSpec((tq, f_pad), lambda i: (i, 0)),
                       pl.BlockSpec((tq, 1), lambda i: (i, 0)),
                       pl.BlockSpec((1, tq), lambda i: (0, i))]),
        compiler_params=pltpu.CompilerParams(dimension_semantics=("parallel",)),
    )(x_p, x_t, w_p, wa1, wa2)

    # Keep h fully resident in VMEM (constant index_map => fetched once per
    # core) unless it would press v7x's 64 MiB VMEM; f2t (1, n_pad) is tiny and
    # always resident.
    h_resident = (n_pad * f_pad * 2) <= (8 << 20)
    if h_resident:
        h_spec = pl.BlockSpec((n_pad, f_pad), lambda qi, ki: (0, 0))
    else:
        h_spec = pl.BlockSpec((tk, f_pad), lambda qi, ki: (ki, 0))

    est = (2 * tq * tk                                       # adj int8 blocks
           + 2 * tq * 4 + 2 * n_pad * 4                      # f1, f2t
           + 2 * (n_pad if h_resident else tk) * f_pad * 2   # h (bf16)
           + 2 * tq * f_pad * 4 + tq * 4                     # out block, rowsum
           + 4 * tq * tk * 4)                                # body intermediates
    vmem_limit = int(min(64 << 20, max(32 << 20, 2 * est)))

    # ---- kernel 2: tiled masked attention + aggregation ----
    out_p = pl.pallas_call(
        functools.partial(_attn_kernel, alpha=float(alpha), tk=tk,
                          h_resident=h_resident),
        out_shape=jax.ShapeDtypeStruct((n_pad, f_pad), jnp.float32),
        grid_spec=pltpu.PrefetchScalarGridSpec(
            num_scalar_prefetch=0,
            grid=(grid_rows, grid_cols),
            in_specs=[pl.BlockSpec((tq, 1), lambda qi, ki: (qi, 0)),
                      pl.BlockSpec((1, n_pad), lambda qi, ki: (0, 0)),
                      pl.BlockSpec((tq, tk), lambda qi, ki: (qi, ki)),
                      h_spec],
            out_specs=pl.BlockSpec((tq, f_pad), lambda qi, ki: (qi, 0)),
            scratch_shapes=[pltpu.VMEM((tq, 1), jnp.float32)]),
        compiler_params=pltpu.CompilerParams(
            dimension_semantics=("parallel", "arbitrary"),
            vmem_limit_bytes=vmem_limit),
        cost_estimate=pl.CostEstimate(flops=int(flops),
                                      transcendentals=int(transc),
                                      bytes_accessed=int(bytes_acc)),
    )(f1, f2t, adj_i8, h)

    return out_p[:N, :out_feat]


# --------------------------------------------------------------------------
# Plain-JAX f32 reference (same math as the PyTorch module, dense form)
# --------------------------------------------------------------------------
def _reference(x, W, a, adj, alpha):
    h = x @ W
    F = W.shape[1]
    f1 = h @ a[0, :F]
    f2 = h @ a[0, F:]
    s = f1[:, None] + f2[None, :]
    lrelu = jnp.where(s > 0, s, alpha * s)
    e = jnp.exp(-lrelu) * adj
    rowsum = e.sum(axis=1, keepdims=True)
    hp = (e @ h) / rowsum
    return jnp.where(hp > 0, hp, jnp.exp(hp) - 1.0)


def _xavier_uniform(key, shape, gain):
    fan_out, fan_in = shape[0], shape[1]
    bound = gain * math.sqrt(6.0 / (fan_in + fan_out))
    return jax.random.uniform(key, shape, jnp.float32, -bound, bound)


def _make_case(key, N, in_feat, out_feat, density):
    kx, kw, ka, kadj = jax.random.split(key, 4)
    x = jax.random.normal(kx, (N, in_feat), jnp.float32)
    W = _xavier_uniform(kw, (in_feat, out_feat), gain=1.414)
    a = _xavier_uniform(ka, (1, 2 * out_feat), gain=1.414)
    # Sparse support as a {0,1} mask; self-loops so every row has >= 1 edge
    # (an isolated node would trip the NaN assert in the PyTorch module).
    adj = (jax.random.uniform(kadj, (N, N)) < density).astype(jnp.float32)
    adj = jnp.maximum(adj, jnp.eye(N, dtype=jnp.float32))
    return x, W, a, adj


if __name__ == "__main__":
    alpha = 0.2  # LeakyReLU negative slope (the module's `alpha`)
    key = jax.random.PRNGKey(0)
    k1, k2 = jax.random.split(key)

    # Case A: module-sized small graph (N=256, in_feat=16, out_feat=8)
    # -> single fused kernel path (h/f1/f2t live in VMEM scratch).
    xA, WA, aA, adjA = _make_case(k1, 256, 16, 8, 0.10)
    outA = jax.block_until_ready(sp_attention_forward(xA, WA, aA, adjA, alpha=alpha))
    refA = _reference(xA, WA, aA, adjA, alpha)
    assert outA.shape == (256, 8)
    assert jnp.all(jnp.isfinite(outA))
    # bf16 aggregation operands + approx reciprocal -> loosened tolerance.
    assert jnp.allclose(outA, refA, atol=3e-2, rtol=3e-2)

    # Case B: larger graph -> two-kernel streaming path with large tiles
    # (tq=512, tk=1024), resident h, and a multi-step column reduction.
    xB, WB, aB, adjB = _make_case(k2, 2048, 32, 16, 0.05)
    outB = jax.block_until_ready(
        sp_attention_forward(xB, WB, aB, adjB, alpha=alpha, fused=False))
    refB = _reference(xB, WB, aB, adjB, alpha)
    assert outB.shape == (2048, 16)
    assert jnp.all(jnp.isfinite(outB))
    assert jnp.allclose(outB, refB, atol=3e-2, rtol=3e-2)

    print("KERNEL_OK")
</pallas_src>

<mosaic_0001>
module attributes {stable_mosaic.version = 11 : i64} {
  func.func @_fused_kernel(%arg0: i32, %arg1: i32, %arg2: memref<256x16xf32, #tpu.memory_space<vmem>>, %arg3: memref<16x256xf32, #tpu.memory_space<vmem>>, %arg4: memref<16x128xf32, #tpu.memory_space<vmem>>, %arg5: memref<16x1xf32, #tpu.memory_space<vmem>>, %arg6: memref<16x1xf32, #tpu.memory_space<vmem>>, %arg7: memref<128x256xi8, #tpu.memory_space<vmem>>, %arg8: memref<128x128xf32, #tpu.memory_space<vmem>>, %arg9: memref<256x128xbf16, #tpu.memory_space<vmem>>, %arg10: memref<256x1xf32, #tpu.memory_space<vmem>>, %arg11: memref<1x256xf32, #tpu.memory_space<vmem>>, %arg12: memref<128x1xf32, #tpu.memory_space<vmem>>) attributes {dimension_semantics = [#tpu.dimension_semantics<parallel>, #tpu.dimension_semantics<arbitrary>], iteration_bounds = array<i64: 2, 1>, scalar_prefetch = 0 : i64, scratch_operands = 4 : i64, tpu.core_type = #tpu.core_type<tc>, window_params = [{pipeline_mode = #tpu.pipeline_mode<synchronous>, transform_indices = @transform_0, window_bounds = array<i64: 256, 16>}, {pipeline_mode = #tpu.pipeline_mode<synchronous>, transform_indices = @transform_1, window_bounds = array<i64: 16, 256>}, {pipeline_mode = #tpu.pipeline_mode<synchronous>, transform_indices = @transform_2, window_bounds = array<i64: 16, 128>}, {pipeline_mode = #tpu.pipeline_mode<synchronous>, transform_indices = @transform_3, window_bounds = array<i64: 16, 1>}, {pipeline_mode = #tpu.pipeline_mode<synchronous>, transform_indices = @transform_4, window_bounds = array<i64: 16, 1>}, {transform_indices = @transform_5, window_bounds = array<i64: 128, 256>}, {transform_indices = @transform_6, window_bounds = array<i64: 128, 128>}]} {
    %c0_i32 = arith.constant 0 : i32
    %0 = arith.cmpi eq, %arg1, %c0_i32 : i32
    %1 = arith.extui %0 : i1 to i32
    %c0_i32_0 = arith.constant 0 : i32
    %2 = arith.cmpi ne, %1, %c0_i32_0 : i32
    scf.if %2 {
      %c0_18 = arith.constant 0 : index
      %c0_19 = arith.constant 0 : index
      %38 = vector.load %arg2[%c0_18, %c0_19] : memref<256x16xf32, #tpu.memory_space<vmem>>, vector<256x16xf32>
      %c0_20 = arith.constant 0 : index
      %c0_21 = arith.constant 0 : index
      %39 = vector.load %arg4[%c0_20, %c0_21] : memref<16x128xf32, #tpu.memory_space<vmem>>, vector<16x128xf32>
      %cst_22 = arith.constant dense<0.000000e+00> : vector<256x128xf32>
      %40 = tpu.matmul %38, %39, %cst_22 {dimension_numbers = #tpu.dot_dimension_numbers<[1], [0], [0], [1], [0, 0, 1, 1], [], []>} : vector<256x16xf32>, vector<16x128xf32>, vector<256x128xf32> -> vector<256x128xf32>
      %41 = arith.truncf %40 : vector<256x128xf32> to vector<256x128xbf16>
      %c0_23 = arith.constant 0 : index
      %c0_24 = arith.constant 0 : index
      %42 = vector.load %arg9[%c0_23, %c0_24] : memref<256x128xbf16, #tpu.memory_space<vmem>>, vector<256x128xbf16>
      tpu.vector_store %arg9[%c0_23, %c0_24], %41 {strides = array<i32>} : memref<256x128xbf16, #tpu.memory_space<vmem>>, vector<256x128xbf16>,
      %c0_25 = arith.constant 0 : index
      %c0_26 = arith.constant 0 : index
      %43 = vector.load %arg5[%c0_25, %c0_26] : memref<16x1xf32, #tpu.memory_space<vmem>>, vector<16x1xf32>
      %cst_27 = arith.constant dense<0.000000e+00> : vector<256x1xf32>
      %44 = tpu.matmul %38, %43, %cst_27 {dimension_numbers = #tpu.dot_dimension_numbers<[1], [0], [0], [1], [0, 0, 1, 1], [], []>} : vector<256x16xf32>, vector<16x1xf32>, vector<256x1xf32> -> vector<256x1xf32>
      %c0_28 = arith.constant 0 : index
      %c0_29 = arith.constant 0 : index
      %45 = vector.load %arg10[%c0_28, %c0_29] : memref<256x1xf32, #tpu.memory_space<vmem>>, vector<256x1xf32>
      tpu.vector_store %arg10[%c0_28, %c0_29], %44 {strides = array<i32>} : memref<256x1xf32, #tpu.memory_space<vmem>>, vector<256x1xf32>,
      %c0_30 = arith.constant 0 : index
      %c0_31 = arith.constant 0 : index
      %46 = vector.load %arg6[%c0_30, %c0_31] : memref<16x1xf32, #tpu.memory_space<vmem>>, vector<16x1xf32>
      %c0_32 = arith.constant 0 : index
      %c0_33 = arith.constant 0 : index
      %47 = vector.load %arg3[%c0_32, %c0_33] : memref<16x256xf32, #tpu.memory_space<vmem>>, vector<16x256xf32>
      %48 = vector.broadcast %46 : vector<16x1xf32> to vector<16x256xf32>
      %49 = arith.mulf %48, %47 : vector<16x256xf32>
      %cst_34 = arith.constant dense<0.000000e+00> : vector<256xf32>
      %50 = vector.multi_reduction <add>, %49, %cst_34 [0] : vector<16x256xf32> to vector<256xf32>
      %51 = vector.shape_cast %50 : vector<256xf32> to vector<1x256xf32>
      %c0_35 = arith.constant 0 : index
      %c0_36 = arith.constant 0 : index
      %52 = vector.load %arg11[%c0_35, %c0_36] : memref<1x256xf32, #tpu.memory_space<vmem>>, vector<1x256xf32>
      tpu.vector_store %arg11[%c0_35, %c0_36], %51 {strides = array<i32>} : memref<1x256xf32, #tpu.memory_space<vmem>>, vector<1x256xf32>,
      %cst_37 = arith.constant 0.000000e+00 : f32
      %53 = vector.broadcast %cst_37 : f32 to vector<128x1xf32>
      %c0_38 = arith.constant 0 : index
      %c0_39 = arith.constant 0 : index
      %54 = vector.load %arg12[%c0_38, %c0_39] : memref<128x1xf32, #tpu.memory_space<vmem>>, vector<128x1xf32>
      tpu.vector_store %arg12[%c0_38, %c0_39], %53 {strides = array<i32>} : memref<128x1xf32, #tpu.memory_space<vmem>>, vector<128x1xf32>,
      %cst_40 = arith.constant 0.000000e+00 : f32
      %55 = vector.broadcast %cst_40 : f32 to vector<128x128xf32>
      %c0_41 = arith.constant 0 : index
      %c0_42 = arith.constant 0 : index
      %56 = vector.load %arg8[%c0_41, %c0_42] : memref<128x128xf32, #tpu.memory_space<vmem>>, vector<128x128xf32>
      tpu.vector_store %arg8[%c0_41, %c0_42], %55 {strides = array<i32>} : memref<128x128xf32, #tpu.memory_space<vmem>>, vector<128x128xf32>,
    } else {
    }
    %c128_i32 = arith.constant 128 : i32
    %3 = arith.muli %arg0, %c128_i32 : i32
    %4 = tpu.assume_multiple %3, 128 : i32
    %c256_i32 = arith.constant 256 : i32
    %5 = arith.muli %arg1, %c256_i32 : i32
    %6 = tpu.assume_multiple %5, 256 : i32
    %7 = arith.index_cast %4 : i32 to index
    %c0 = arith.constant 0 : index
    %8 = vector.load %arg10[%7, %c0] : memref<256x1xf32, #tpu.memory_space<vmem>>, vector<128x1xf32>
    %c0_1 = arith.constant 0 : index
    %9 = arith.index_cast %6 : i32 to index
    %10 = vector.load %arg11[%c0_1, %9] : memref<1x256xf32, #tpu.memory_space<vmem>>, vector<1x256xf32>
    %11 = arith.index_cast %6 : i32 to index
    %c0_2 = arith.constant 0 : index
    %12 = vector.load %arg9[%11, %c0_2] : memref<256x128xbf16, #tpu.memory_space<vmem>>, vector<256x128xbf16>
    %13 = vector.broadcast %8 : vector<128x1xf32> to vector<128x256xf32>
    %14 = vector.broadcast %10 : vector<1x256xf32> to vector<128x256xf32>
    %15 = arith.addf %13, %14 : vector<128x256xf32>
    %c0_3 = arith.constant 0 : index
    %c0_4 = arith.constant 0 : index
    %16 = vector.load %arg7[%c0_3, %c0_4] : memref<128x256xi8, #tpu.memory_space<vmem>>, vector<128x256xi8>
    %17 = arith.sitofp %16 : vector<128x256xi8> to vector<128x256xf32>
    %cst = arith.constant 0.000000e+00 : f32
    %18 = vector.broadcast %cst : f32 to vector<128x256xf32>
    %19 = arith.subf %18, %15 : vector<128x256xf32>
    %cst_5 = arith.constant -2.000000e-01 : f32
    %20 = vector.broadcast %cst_5 : f32 to vector<128x256xf32>
    %21 = arith.mulf %20, %15 : vector<128x256xf32>
    %22 = arith.minimumf %19, %21 : vector<128x256xf32>
    %23 = math.exp %22 : vector<128x256xf32>
    %24 = arith.mulf %23, %17 : vector<128x256xf32>
    %c0_6 = arith.constant 0 : index
    %c0_7 = arith.constant 0 : index
    %25 = vector.load %arg12[%c0_6, %c0_7] : memref<128x1xf32, #tpu.memory_space<vmem>>, vector<128x1xf32>
    %cst_8 = arith.constant dense<0.000000e+00> : vector<128xf32>
    %26 = vector.multi_reduction <add>, %24, %cst_8 [1] : vector<128x256xf32> to vector<128xf32>
    %27 = vector.shape_cast %26 : vector<128xf32> to vector<128x1xf32>
    %28 = arith.addf %25, %27 : vector<128x1xf32>
    %c0_9 = arith.constant 0 : index
    %c0_10 = arith.constant 0 : index
    %29 = vector.load %arg12[%c0_9, %c0_10] : memref<128x1xf32, #tpu.memory_space<vmem>>, vector<128x1xf32>
    tpu.vector_store %arg12[%c0_9, %c0_10], %28 {strides = array<i32>} : memref<128x1xf32, #tpu.memory_space<vmem>>, vector<128x1xf32>,
    %c0_11 = arith.constant 0 : index
    %c0_12 = arith.constant 0 : index
    %30 = vector.load %arg8[%c0_11, %c0_12] : memref<128x128xf32, #tpu.memory_space<vmem>>, vector<128x128xf32>
    %31 = arith.truncf %24 : vector<128x256xf32> to vector<128x256xbf16>
    %cst_13 = arith.constant dense<0.000000e+00> : vector<128x128xf32>
    %32 = tpu.matmul %31, %12, %cst_13 {dimension_numbers = #tpu.dot_dimension_numbers<[1], [0], [0], [1], [0, 0, 1, 1], [], []>} : vector<128x256xbf16>, vector<256x128xbf16>, vector<128x128xf32> -> vector<128x128xf32>
    %33 = arith.addf %30, %32 : vector<128x128xf32>
    %c0_14 = arith.constant 0 : index
    %c0_15 = arith.constant 0 : index
    %34 = vector.load %arg8[%c0_14, %c0_15] : memref<128x128xf32, #tpu.memory_space<vmem>>, vector<128x128xf32>
    tpu.vector_store %arg8[%c0_14, %c0_15], %33 {strides = array<i32>} : memref<128x128xf32, #tpu.memory_space<vmem>>, vector<128x128xf32>,
    %c0_i32_16 = arith.constant 0 : i32
    %35 = arith.cmpi eq, %arg1, %c0_i32_16 : i32
    %36 = arith.extui %35 : i1 to i32
    %c0_i32_17 = arith.constant 0 : i32
    %37 = arith.cmpi ne, %36, %c0_i32_17 : i32
    scf.if %37 {
      %c0_18 = arith.constant 0 : index
      %c0_19 = arith.constant 0 : index
      %38 = vector.load %arg12[%c0_18, %c0_19] : memref<128x1xf32, #tpu.memory_space<vmem>>, vector<128x1xf32>
      %cst_20 = arith.constant 1.000000e-30 : f32
      %39 = vector.broadcast %cst_20 : f32 to vector<128x1xf32>
      %40 = arith.maximumf %38, %39 : vector<128x1xf32>
      %41 = tpu.reciprocal %40 {approx = true} : vector<128x1xf32> -> vector<128x1xf32>
      %c0_21 = arith.constant 0 : index
      %c0_22 = arith.constant 0 : index
      %42 = vector.load %arg8[%c0_21, %c0_22] : memref<128x128xf32, #tpu.memory_space<vmem>>, vector<128x128xf32>
      %43 = vector.broadcast %41 : vector<128x1xf32> to vector<128x128xf32>
      %44 = arith.mulf %42, %43 : vector<128x128xf32>
      %cst_23 = arith.constant 0.000000e+00 : f32
      %45 = vector.broadcast %cst_23 : f32 to vector<128x128xf32>
      %46 = arith.cmpf ogt, %44, %45 : vector<128x128xf32>
      %47 = math.exp %44 : vector<128x128xf32>
      %cst_24 = arith.constant 1.000000e+00 : f32
      %48 = vector.broadcast %cst_24 : f32 to vector<128x128xf32>
      %49 = arith.subf %47, %48 : vector<128x128xf32>
      %50 = arith.select %46, %44, %49 : vector<128x128xi1>, vector<128x128xf32>
      %c0_25 = arith.constant 0 : index
      %c0_26 = arith.constant 0 : index
      %51 = vector.load %arg8[%c0_25, %c0_26] : memref<128x128xf32, #tpu.memory_space<vmem>>, vector<128x128xf32>
      tpu.vector_store %arg8[%c0_25, %c0_26], %50 {strides = array<i32>} : memref<128x128xf32, #tpu.memory_space<vmem>>, vector<128x128xf32>,
    } else {
    }
    return
  }
  func.func @transform_0(%arg0: i32, %arg1: i32) -> (i32, i32) {
    %c0_i32 = arith.constant 0 : i32
    %c0_i32_0 = arith.constant 0 : i32
    %c0_i32_1 = arith.constant 0 : i32
    return %c0_i32, %c0_i32_0 : i32, i32
  }
  func.func @transform_1(%arg0: i32, %arg1: i32) -> (i32, i32) {
    %c0_i32 = arith.constant 0 : i32
    %c0_i32_0 = arith.constant 0 : i32
    %c0_i32_1 = arith.constant 0 : i32
    return %c0_i32, %c0_i32_0 : i32, i32
  }
  func.func @transform_2(%arg0: i32, %arg1: i32) -> (i32, i32) {
    %c0_i32 = arith.constant 0 : i32
    %c0_i32_0 = arith.constant 0 : i32
    %c0_i32_1 = arith.constant 0 : i32
    return %c0_i32, %c0_i32_0 : i32, i32
  }
  func.func @transform_3(%arg0: i32, %arg1: i32) -> (i32, i32) {
    %c0_i32 = arith.constant 0 : i32
    %c0_i32_0 = arith.constant 0 : i32
    %c0_i32_1 = arith.constant 0 : i32
    return %c0_i32, %c0_i32_0 : i32, i32
  }
  func.func @transform_4(%arg0: i32, %arg1: i32) -> (i32, i32) {
    %c0_i32 = arith.constant 0 : i32
    %c0_i32_0 = arith.constant 0 : i32
    %c0_i32_1 = arith.constant 0 : i32
    return %c0_i32, %c0_i32_0 : i32, i32
  }
  func.func @transform_5(%arg0: i32, %arg1: i32) -> (i32, i32) {
    %c0_i32 = arith.constant 0 : i32
    return %arg0, %arg1 : i32, i32
  }
  func.func @transform_6(%arg0: i32, %arg1: i32) -> (i32, i32) {
    %c0_i32 = arith.constant 0 : i32
    %c0_i32_0 = arith.constant 0 : i32
    return %arg0, %c0_i32 : i32, i32
  }
}

</mosaic_0001>

<llo_original>
// kernel: tpu_custom_call.1
$region0: #{tpu_custom_call.1}
  #allocation0 [shape = 'u32[]', space=smem, size = 0x4, offset = 0x4, fixed_abs, tag = 'smem constant byte address 0x4 - core index']
  #allocation1 [shape = 'u32[144,128]{1,0:T(1,128)}', space=vmem, size = 0x12000, scoped, tag = 'internal scratch']
  #allocation2 [shape = 'bf16[256,128]{1,0:T(8,128)(2,1)}', space=vmem, size = 0x10000, scoped, tag = 'scratch operand']
  #allocation3 [shape = 'f32[256,1]{1,0:T(8,128)}', space=vmem, size = 0x20000, scoped, tag = 'scratch operand']
  #allocation4 [shape = 'f32[1,256]{1,0:T(1,128)}', space=vmem, size = 0x400, scoped, tag = 'scratch operand']
  #allocation5 [shape = 'f32[128,1]{1,0:T(8,128)}', space=vmem, size = 0x10000, scoped, tag = 'scratch operand']
  %s0 = inlined_call_operand.vmem [shape: f32[256,16], index: 0, kind: input, shape index: {}]
  %s1 = inlined_call_operand.vmem [shape: f32[16,256], index: 1, kind: input, shape index: {}]
  %s2 = inlined_call_operand.vmem [shape: f32[16,128], index: 2, kind: input, shape index: {}]
  %s3 = inlined_call_operand.vmem [shape: f32[16,1], index: 3, kind: input, shape index: {}]
  %s4 = inlined_call_operand.vmem [shape: f32[16,1], index: 4, kind: input, shape index: {}]
  %s5 = inlined_call_operand.vmem [shape: s8[256,256], index: 5, kind: input, shape index: {}]
  %s6 = inlined_call_operand.hbm [shape: f32[256,128], index: 6, kind: output, shape index: {}]
  %s7 = sld [smem:[#allocation0]]
  $region65: #{tpu_custom_call.1} parent=0
    _
  %s9 = ssub.s32 1, %s7
  %s10 = scalar_select 0, %s9, %s7
  $region1: #{tpu_custom_call.1} parent=0
    #allocation6 [shape = 'u8[131072]{0}', space=vmem, size = 0x20000, scoped, tag = 'output window, operand 0']
    #allocation7 [shape = 's32[2]{0}', space=sflag, size = 0x8, scoped, tag = 'scoped memory for tpu_custom_call.1']
    %11 = vsyncpa [#allocation7], 0
    %s12 = scalar_lea.sflag [#allocation7], 1
    %13 = vsyncpa %s12, 0
    loop: start=0, step=1, limit=4
    $region2: #{tpu_custom_call.1} parent=1 // loop_pre_header
      _
    $region3: #{tpu_custom_call.1} parent=1 // loop_header
      %s15 = sphi 0, %s19
      %p16 = scmp.ge.s32.totalorder %s15, 4
      %s22 = sphi 0, %s34
      %s23 = sphi 0, %s30
      %s24 = sphi 0, %s22
      %s25 = sphi 0, %s23
      %s26 = sphi 0, %s24
      %s27 = sphi 0, %s25
      %s35 = sphi 0, %s35
      %s37 = sphi 0, %s35
      %s38 = sphi 0, %s37
      %s52 = sphi 0, %s38
      %s56 = sphi 0, %s56
      %s58 = sphi 0, %s56
      %s59 = sphi 0, %s58
      %s73 = sphi 0, %s59
      %s77 = sphi 0, %s77
      %s79 = sphi 0, %s77
      %s80 = sphi 0, %s79
      %s94 = sphi 0, %s80
      %s98 = sphi 0, %s98
      %s100 = sphi 0, %s98
      %s101 = sphi 0, %s100
      %s115 = sphi 0, %s101
      %s119 = sphi 0, %s119
      %s121 = sphi 0, %s119
      %s122 = sphi 0, %s121
      %s136 = sphi 0, %s122
      %s144 = sphi 0, %s146
      %s147 = sphi 0, %s144
      %s148 = sphi 0, %s147
      %s164 = sphi 0, %s148
      %s170 = sphi 0, %s172
      %s173 = sphi 0, %s170
      %s174 = sphi 0, %s173
      %s190 = sphi 0, %s174
    $region4: #{tpu_custom_call.1} parent=1 // loop_header_branch
      %18 = sbr.rel (%p16) target = $region8
    $region5: #{tpu_custom_call.1} parent=1 // loop_body
      %s20 = ssub.s32 %s15, 1
      %s21 = ssub.s32 %s15, 2
      %s28 = sadd.s32 1, %s23
      %p29 = scmp.ge.s32.totalorder %s28, 1
      %s30 = scalar_select %p29, 0, %s28
      %s31 = sadd.s32 1, %s22
      %s32 = scalar_select %p29, %s31, %s22
      %p33 = scmp.ge.s32.totalorder %s32, 2
      %s34 = scalar_select %p33, 0, %s32
      %s36 = sadd.s32 %s35, 1
      %p39 = scmp.eq.s32.totalorder %s15, 1
      %p40 = scmp.ne.s32.totalorder %s35, %s37
      %p41 = scmp.eq.s32.totalorder %s15, 0
      %p42 = por %p40, %p41
      %p43 = scmp.ne.s32.totalorder %s35, %s37
      %p44 = scmp.eq.s32.totalorder %s20, 1
      %p45 = por %p43, %p44
      %p46 = scmp.ne.s32.totalorder %s37, %s38
      %p47 = scmp.eq.s32.totalorder %s20, 0
      %p48 = por %p46, %p47
      %p49 = scmp.ne.s32.totalorder %s37, %s38
      %p50 = scmp.eq.s32.totalorder %s21, 1
      %p51 = por %p49, %p50
      %p53 = scmp.ne.s32.totalorder %s38, %s52
      %p54 = scmp.eq.s32.totalorder %s21, 0
      %p55 = por %p53, %p54
      %s57 = sadd.s32 %s56, 1
      %p60 = scmp.eq.s32.totalorder %s15, 1
      %p61 = scmp.ne.s32.totalorder %s56, %s58
      %p62 = scmp.eq.s32.totalorder %s15, 0
      %p63 = por %p61, %p62
      %p64 = scmp.ne.s32.totalorder %s56, %s58
      %p65 = scmp.eq.s32.totalorder %s20, 1
      %p66 = por %p64, %p65
      %p67 = scmp.ne.s32.totalorder %s58, %s59
      %p68 = scmp.eq.s32.totalorder %s20, 0
      %p69 = por %p67, %p68
      %p70 = scmp.ne.s32.totalorder %s58, %s59
      %p71 = scmp.eq.s32.totalorder %s21, 1
      %p72 = por %p70, %p71
      %p74 = scmp.ne.s32.totalorder %s59, %s73
      %p75 = scmp.eq.s32.totalorder %s21, 0
      %p76 = por %p74, %p75
      %s78 = sadd.s32 %s77, 1
      %p81 = scmp.eq.s32.totalorder %s15, 1
      %p82 = scmp.ne.s32.totalorder %s77, %s79
      %p83 = scmp.eq.s32.totalorder %s15, 0
      %p84 = por %p82, %p83
      %p85 = scmp.ne.s32.totalorder %s77, %s79
      %p86 = scmp.eq.s32.totalorder %s20, 1
      %p87 = por %p85, %p86
      %p88 = scmp.ne.s32.totalorder %s79, %s80
      %p89 = scmp.eq.s32.totalorder %s20, 0
      %p90 = por %p88, %p89
      %p91 = scmp.ne.s32.totalorder %s79, %s80
      %p92 = scmp.eq.s32.totalorder %s21, 1
      %p93 = por %p91, %p92
      %p95 = scmp.ne.s32.totalorder %s80, %s94
      %p96 = scmp.eq.s32.totalorder %s21, 0
      %p97 = por %p95, %p96
      %s99 = sadd.s32 %s98, 1
      %p102 = scmp.eq.s32.totalorder %s15, 1
      %p103 = scmp.ne.s32.totalorder %s98, %s100
      %p104 = scmp.eq.s32.totalorder %s15, 0
      %p105 = por %p103, %p104
      %p106 = scmp.ne.s32.totalorder %s98, %s100
      %p107 = scmp.eq.s32.totalorder %s20, 1
      %p108 = por %p106, %p107
      %p109 = scmp.ne.s32.totalorder %s100, %s101
      %p110 = scmp.eq.s32.totalorder %s20, 0
      %p111 = por %p109, %p110
      %p112 = scmp.ne.s32.totalorder %s100, %s101
      %p113 = scmp.eq.s32.totalorder %s21, 1
      %p114 = por %p112, %p113
      %p116 = scmp.ne.s32.totalorder %s101, %s115
      %p117 = scmp.eq.s32.totalorder %s21, 0
      %p118 = por %p116, %p117
      %s120 = sadd.s32 %s119, 1
      %p123 = scmp.eq.s32.totalorder %s15, 1
      %p124 = scmp.ne.s32.totalorder %s119, %s121
      %p125 = scmp.eq.s32.totalorder %s15, 0
      %p126 = por %p124, %p125
      %p127 = scmp.ne.s32.totalorder %s119, %s121
      %p128 = scmp.eq.s32.totalorder %s20, 1
      %p129 = por %p127, %p128
      %p130 = scmp.ne.s32.totalorder %s121, %s122
      %p131 = scmp.eq.s32.totalorder %s20, 0
      %p132 = por %p130, %p131
      %p133 = scmp.ne.s32.totalorder %s121, %s122
      %p134 = scmp.eq.s32.totalorder %s21, 1
      %p135 = por %p133, %p134
      %p137 = scmp.ne.s32.totalorder %s122, %s136
      %p138 = scmp.eq.s32.totalorder %s21, 0
      %p139 = por %p137, %p138
      %s140 = ssub.s32 %s22, %s34
      %s141 = ssub.s32 %s23, %s30
      %s142 = sor.u32 %s140, %s141
      %p143 = scmp.eq.s32.totalorder %s142, 0
      %s145 = sadd.s32 %s144, 1
      %s146 = scalar_select %p143, %s144, %s145
      %p149 = pneg %p143
      %p150 = scmp.eq.s32.totalorder %s15, 1
      %p151 = por %p149, %p150
      %p152 = scmp.ne.s32.totalorder %s144, %s147
      %p153 = scmp.eq.s32.totalorder %s15, 0
      %p154 = por %p152, %p153
      %p155 = scmp.ne.s32.totalorder %s144, %s147
      %p156 = scmp.eq.s32.totalorder %s20, 1
      %p157 = por %p155, %p156
      %p158 = scmp.ne.s32.totalorder %s147, %s148
      %p159 = scmp.eq.s32.totalorder %s20, 0
      %p160 = por %p158, %p159
      %p161 = scmp.ne.s32.totalorder %s147, %s148
      %p162 = scmp.eq.s32.totalorder %s21, 1
      %p163 = por %p161, %p162
      %p165 = scmp.ne.s32.totalorder %s148, %s164
      %p166 = scmp.eq.s32.totalorder %s21, 0
      %p167 = por %p165, %p166
      %s168 = ssub.s32 %s22, %s34
      %p169 = scmp.eq.s32.totalorder %s168, 0
      %s171 = sadd.s32 %s170, 1
      %s172 = scalar_select %p169, %s170, %s171
      %p175 = pneg %p169
      %p176 = scmp.eq.s32.totalorder %s15, 1
      %p177 = por %p175, %p176
      %p178 = scmp.ne.s32.totalorder %s170, %s173
      %p179 = scmp.eq.s32.totalorder %s15, 0
      %p180 = por %p178, %p179
      %p181 = scmp.ne.s32.totalorder %s170, %s173
      %p182 = scmp.eq.s32.totalorder %s20, 1
      %p183 = por %p181, %p182
      %p184 = scmp.ne.s32.totalorder %s173, %s174
      %p185 = scmp.eq.s32.totalorder %s20, 0
      %p186 = por %p184, %p185
      %p187 = scmp.ne.s32.totalorder %s173, %s174
      %p188 = scmp.eq.s32.totalorder %s21, 1
      %p189 = por %p187, %p188
      %p191 = scmp.ne.s32.totalorder %s174, %s190
      %p192 = scmp.eq.s32.totalorder %s21, 0
      %p193 = por %p191, %p192
      %p194 = scmp.le.s32.totalorder 1, %s15
      %p195 = scmp.lt.s32.totalorder %s15, 3
      %p196 = pnand %p194, %p195
      %p197 = pneg %p196
      // Predicated region
      $region9: #{tpu_custom_call.1} parent=5 // pred_check
        _
      $region10: #{tpu_custom_call.1} parent=5 // pred_check_branch
        %199 = sbr.rel (%p196) target = $region12
      $region11: #{tpu_custom_call.1} parent=5 // pred_region
        %s200 = ssub.s32 %s15, 1
        // Predicated region
        $region13: #{tpu_custom_call.1} parent=11 // pred_check
          %p201 = pneg %p48
        $region14: #{tpu_custom_call.1} parent=11 // pred_check_branch
          %203 = sbr.rel (%p201) target = $region16
        $region15: #{tpu_custom_call.1} parent=11 // pred_region
          _
        $region16: #{tpu_custom_call.1} parent=11 // pred_fallthru
          _
        // Predicated region
        $region17: #{tpu_custom_call.1} parent=11 // pred_check
          %p204 = pneg %p69
        $region18: #{tpu_custom_call.1} parent=11 // pred_check_branch
          %206 = sbr.rel (%p204) target = $region20
        $region19: #{tpu_custom_call.1} parent=11 // pred_region
          _
        $region20: #{tpu_custom_call.1} parent=11 // pred_fallthru
          _
        // Predicated region
        $region21: #{tpu_custom_call.1} parent=11 // pred_check
          %p207 = pneg %p90
        $region22: #{tpu_custom_call.1} parent=11 // pred_check_branch
          %209 = sbr.rel (%p207) target = $region24
        $region23: #{tpu_custom_call.1} parent=11 // pred_region
          _
        $region24: #{tpu_custom_call.1} parent=11 // pred_fallthru
          _
        // Predicated region
        $region25: #{tpu_custom_call.1} parent=11 // pred_check
          %p210 = pneg %p111
        $region26: #{tpu_custom_call.1} parent=11 // pred_check_branch
          %212 = sbr.rel (%p210) target = $region28
        $region27: #{tpu_custom_call.1} parent=11 // pred_region
          _
        $region28: #{tpu_custom_call.1} parent=11 // pred_fallthru
          _
        // Predicated region
        $region29: #{tpu_custom_call.1} parent=11 // pred_check
          %p213 = pneg %p132
        $region30: #{tpu_custom_call.1} parent=11 // pred_check_branch
          %215 = sbr.rel (%p213) target = $region32
        $region31: #{tpu_custom_call.1} parent=11 // pred_region
          _
        $region32: #{tpu_custom_call.1} parent=11 // pred_fallthru
          _
      $region12: #{tpu_custom_call.1} parent=5 // pred_fallthru
        _
      %p216 = scmp.lt.s32.totalorder %s15, 2
      // Predicated region
      $region33: #{tpu_custom_call.1} parent=5 // pred_check
        %p217 = pneg %p216
      $region34: #{tpu_custom_call.1} parent=5 // pred_check_branch
        %219 = sbr.rel (%p217) target = $region36
      $region35: #{tpu_custom_call.1} parent=5 // pred_region
        // Predicated region
        $region37: #{tpu_custom_call.1} parent=35 // pred_check
          %p220 = pneg %p154
        $region38: #{tpu_custom_call.1} parent=35 // pred_check_branch
          %222 = sbr.rel (%p220) target = $region40
        $region39: #{tpu_custom_call.1} parent=35 // pred_region
          %s223 = smul.u32 4, %s22
          %s224 = smul.u32 2, %s23
          %p225 = scmp.lt.s32.totalorder %s223, 7
          %s226 = scalar_select %p225, %s223, 7
          %p227 = scmp.lt.s32.totalorder %s224, 1
          %s228 = scalar_select %p227, %s224, 1
          %s229 = smul.addr %s226, 2
          %s230 = sadd.s32 %s228, %s229
          %s231 = smul.addr %s230, 8
          %s232 = scalar_lea.vmem %s5, %s231
          %s233 = smul.u32 4, %s22
          %s234 = smul.u32 2, %s23
        $region40: #{tpu_custom_call.1} parent=35 // pred_fallthru
          _
      $region36: #{tpu_custom_call.1} parent=5 // pred_fallthru
        _
      %p235 = scmp.le.s32.totalorder 1, %s15
      %p236 = scmp.lt.s32.totalorder %s15, 3
      %p237 = pnand %p235, %p236
      %p238 = pneg %p237
      // Predicated region
      $region41: #{tpu_custom_call.1} parent=5 // pred_check
        _
      $region42: #{tpu_custom_call.1} parent=5 // pred_check_branch
        %240 = sbr.rel (%p237) target = $region44
      $region43: #{tpu_custom_call.1} parent=5 // pred_region
        %s241 = ssub.s32 %s15, 1
        %p242 = pneg %p48
        %p243 = pneg %p45
        %p244 = pneg %p69
        %p245 = pneg %p66
        %p246 = pneg %p90
        %p247 = pneg %p87
        %p248 = pneg %p111
        %p249 = pneg %p108
        %p250 = pneg %p132
        %p251 = pneg %p129
        %s252 = smul.u32 4, %s24
        %s253 = smul.u32 2, %s25
        %p254 = scmp.lt.s32.totalorder %s252, 7
        %s255 = scalar_select %p254, %s252, 7
        %p256 = scmp.lt.s32.totalorder %s253, 1
        %s257 = scalar_select %p256, %s253, 1
        %s258 = smul.addr %s255, 2
        %s259 = sadd.s32 %s257, %s258
        %s260 = smul.addr %s259, 8
        %s261 = scalar_lea.vmem %s5, %s260
        %p262 = pneg %p160
        %p263 = pneg %p157
        %p264 = pneg %p186
        %p265 = pneg %p183
        %s266 = sand.u32 %s173, 1
        %s267 = scalar_lea.sflag [#allocation7], %s266
        %s268 = sand.u32 %s173, 1
        %s269 = smul.addr %s268, 128
        %s270 = scalar_lea.vmem [#allocation6], %s269
        %s271 = smul.u32 4, %s24
        %s272 = smul.u32 2, %s25
        %p273 = scmp.lt.s32.totalorder %s271, 7
        %s274 = scalar_select %p273, %s271, 7
        %p275 = scmp.lt.s32.totalorder %s272, 1
        %s276 = scalar_select %p275, %s272, 1
        %s277 = smul.addr %s274, 2
        %s278 = sadd.s32 %s276, %s277
        %s279 = smul.addr %s278, 8
        %s280 = scalar_lea.vmem %s5, %s279
        %s281 = smul.u32 4, %s24
        %s282 = smul.u32 2, %s25
        %s283 = smul.u32 16, %s24
        %p285 = scmp.eq.s32.totalorder %s25, 0
        // Predicated region
        $region45: #{tpu_custom_call.1} parent=43 // pred_check
          %p286 = pneg %p285
        $region46: #{tpu_custom_call.1} parent=43 // pred_check_branch
          %288 = sbr.rel (%p286) target = $region48
        $region47: #{tpu_custom_call.1} parent=43 // pred_region
          %v289 = vld [vmem:[%s0] sm:$0xff]
          %v290 = vld [vmem:[%s0 + $0x8] sm:$0xff]
          %v291 = vld [vmem:[%s0 + $0x10] sm:$0xff]
          %v292 = vld [vmem:[%s0 + $0x18] sm:$0xff]
          %v293 = vld [vmem:[%s0 + $0x20] sm:$0xff]
          %v294 = vld [vmem:[%s0 + $0x28] sm:$0xff]
          %v295 = vld [vmem:[%s0 + $0x30] sm:$0xff]
          %v296 = vld [vmem:[%s0 + $0x38] sm:$0xff]
          %v297 = vld [vmem:[%s0 + $0x40] sm:$0xff]
          %v298 = vld [vmem:[%s0 + $0x48] sm:$0xff]
          %v299 = vld [vmem:[%s0 + $0x50] sm:$0xff]
          %v300 = vld [vmem:[%s0 + $0x58] sm:$0xff]
          %v301 = vld [vmem:[%s0 + $0x60] sm:$0xff]
          %v302 = vld [vmem:[%s0 + $0x68] sm:$0xff]
          %v303 = vld [vmem:[%s0 + $0x70] sm:$0xff]
          %v304 = vld [vmem:[%s0 + $0x78] sm:$0xff]
          %v305 = vld [vmem:[%s0 + $0x80] sm:$0xff]
          %v306 = vld [vmem:[%s0 + $0x88] sm:$0xff]
          %v307 = vld [vmem:[%s0 + $0x90] sm:$0xff]
          %v308 = vld [vmem:[%s0 + $0x98] sm:$0xff]
          %v309 = vld [vmem:[%s0 + $0xa0] sm:$0xff]
          %v310 = vld [vmem:[%s0 + $0xa8] sm:$0xff]
          %v311 = vld [vmem:[%s0 + $0xb0] sm:$0xff]
          %v312 = vld [vmem:[%s0 + $0xb8] sm:$0xff]
          %v313 = vld [vmem:[%s0 + $0xc0] sm:$0xff]
          %v314 = vld [vmem:[%s0 + $0xc8] sm:$0xff]
          %v315 = vld [vmem:[%s0 + $0xd0] sm:$0xff]
          %v316 = vld [vmem:[%s0 + $0xd8] sm:$0xff]
          %v317 = vld [vmem:[%s0 + $0xe0] sm:$0xff]
          %v318 = vld [vmem:[%s0 + $0xe8] sm:$0xff]
          %v319 = vld [vmem:[%s0 + $0xf0] sm:$0xff]
          %v320 = vld [vmem:[%s0 + $0xf8] sm:$0xff]
          %v321 = vld [vmem:[%s2] sm:$0xff]
          %v322 = vld [vmem:[%s2 + $0x8] sm:$0xff]
          %vm323 = vcmask 130048
          %v325 = vsel %vm323, %v289, 0
          %v328 = vsel %vm323, %v290, 0
          %v331 = vsel %vm323, %v291, 0
          %v334 = vsel %vm323, %v292, 0
          %v337 = vsel %vm323, %v293, 0
          %v340 = vsel %vm323, %v294, 0
          %v343 = vsel %vm323, %v295, 0
          %v346 = vsel %vm323, %v296, 0
          %v349 = vsel %vm323, %v297, 0
          %v352 = vsel %vm323, %v298, 0
          %v355 = vsel %vm323, %v299, 0
          %v358 = vsel %vm323, %v300, 0
          %v361 = vsel %vm323, %v301, 0
          %v364 = vsel %vm323, %v302, 0
          %v367 = vsel %vm323, %v303, 0
          %v370 = vsel %vm323, %v304, 0
          %v373 = vsel %vm323, %v305, 0
          %v376 = vsel %vm323, %v306, 0
          %v379 = vsel %vm323, %v307, 0
          %v382 = vsel %vm323, %v308, 0
          %v385 = vsel %vm323, %v309, 0
          %v388 = vsel %vm323, %v310, 0
          %v391 = vsel %vm323, %v311, 0
          %v394 = vsel %vm323, %v312, 0
          %v397 = vsel %vm323, %v313, 0
          %v400 = vsel %vm323, %v314, 0
          %v403 = vsel %vm323, %v315, 0
          %v406 = vsel %vm323, %v316, 0
          %v409 = vsel %vm323, %v317, 0
          %v412 = vsel %vm323, %v318, 0
          %v415 = vsel %vm323, %v319, 0
          %v418 = vsel %vm323, %v320, 0
          %420 = vmatprep.subr.mxu0 0.0
          %421 = vmatpush1.msra.mxu0 0.0
          %422 = vmatprep.subr.mxu0 0.0
          %423 = vmatpush1.msra.mxu0 0.0
          %424 = vmatprep.subr.mxu0 0.0
          %425 = vmatpush1.msra.mxu0 0.0
          %426 = vmatprep.subr.mxu0 0.0
          %427 = vmatpush1.msra.mxu0 0.0
          %428 = vmatprep.subr.mxu0 0.0
          %429 = vmatpush1.msra.mxu0 0.0
          %430 = vmatprep.subr.mxu0 0.0
          %431 = vmatpush1.msra.mxu0 0.0
          %432 = vmatprep.subr.mxu0 0.0
          %433 = vmatpush1.msra.mxu0 0.0
          %434 = vmatprep.subr.mxu0 0.0
          %435 = vmatpush1.msra.mxu0 0.0
          %436 = vmatprep.subr.mxu0 0.0
          %437 = vmatpush1.msra.mxu0 0.0
          %438 = vmatprep.subr.mxu0 0.0
          %439 = vmatpush1.msra.mxu0 0.0
          %440 = vmatprep.subr.mxu0 0.0
          %441 = vmatpush1.msra.mxu0 0.0
          %442 = vmatprep.subr.mxu0 0.0
          %443 = vmatpush1.msra.mxu0 0.0
          %444 = vmatprep.subr.mxu0 0.0
          %445 = vmatpush1.msra.mxu0 0.0
          %446 = vmatprep.subr.mxu0 0.0
          %447 = vmatpush1.msra.mxu0 0.0
          %448 = vmatprep.subr.mxu0 0.0
          %449 = vmatpush1.msra.mxu0 %v322
          %450 = vmatprep.subr.mxu0 0.0
          %451 = vmatpush1.msra.mxu0 %v321
          %452 = vmatprep.subr.mxu0 0.0
          %453 = vmatpush2.msra.mxu0 0.0
          %454 = vmatprep.subr.mxu0 0.0
          %455 = vmatpush2.msra.mxu0 0.0
          %456 = vmatprep.subr.mxu0 0.0
          %457 = vmatpush2.msra.mxu0 0.0
          %458 = vmatprep.subr.mxu0 0.0
          %459 = vmatpush2.msra.mxu0 0.0
          %460 = vmatprep.subr.mxu0 0.0
          %461 = vmatpush2.msra.mxu0 0.0
          %462 = vmatprep.subr.mxu0 0.0
          %463 = vmatpush2.msra.mxu0 0.0
          %464 = vmatprep.subr.mxu0 0.0
          %465 = vmatpush2.msra.mxu0 0.0
          %466 = vmatprep.subr.mxu0 0.0
          %467 = vmatpush2.msra.mxu0 0.0
          %468 = vmatprep.subr.mxu0 0.0
          %469 = vmatpush2.msra.mxu0 0.0
          %470 = vmatprep.subr.mxu0 0.0
          %471 = vmatpush2.msra.mxu0 0.0
          %472 = vmatprep.subr.mxu0 0.0
          %473 = vmatpush2.msra.mxu0 0.0
          %474 = vmatprep.subr.mxu0 0.0
          %475 = vmatpush2.msra.mxu0 0.0
          %476 = vmatprep.subr.mxu0 0.0
          %477 = vmatpush2.msra.mxu0 0.0
          %478 = vmatprep.subr.mxu0 0.0
          %479 = vmatpush2.msra.mxu0 0.0
          %480 = vmatprep.subr.mxu0 0.0
          %481 = vmatpush2.msra.mxu0 0.0
          %482 = vmatprep.subr.mxu0 0.0
          %483 = vmatpush2.msra.mxu0 0.0
          %484 = vmatprep.mubr.f32.mxu0 0.0
          %485 = vmatmul.mubr.f32.gmra.mxu0 %v325
          %v486 = vpop.f32.mrf.mxu0
          %v487 = vadd.f32 0.0, %v486
          %v488 = vpop.f32.mrf.mxu0
          %489 = vmatprep.mubr.f32.mxu0 0.0
          %490 = vmatmul.mubr.f32.gmra.mxu0 %v328
          %v491 = vpop.f32.mrf.mxu0
          %v492 = vadd.f32 0.0, %v491
          %v493 = vpop.f32.mrf.mxu0
          %494 = vmatprep.mubr.f32.mxu0 0.0
          %495 = vmatmul.mubr.f32.gmra.mxu0 %v331
          %v496 = vpop.f32.mrf.mxu0
          %v497 = vadd.f32 0.0, %v496
          %v498 = vpop.f32.mrf.mxu0
          %499 = vmatprep.mubr.f32.mxu0 0.0
          %500 = vmatmul.mubr.f32.gmra.mxu0 %v334
          %v501 = vpop.f32.mrf.mxu0
          %v502 = vadd.f32 0.0, %v501
          %v503 = vpop.f32.mrf.mxu0
          %504 = vmatprep.mubr.f32.mxu0 0.0
          %505 = vmatmul.mubr.f32.gmra.mxu0 %v337
          %v506 = vpop.f32.mrf.mxu0
          %v507 = vadd.f32 0.0, %v506
          %v508 = vpop.f32.mrf.mxu0
          %509 = vmatprep.mubr.f32.mxu0 0.0
          %510 = vmatmul.mubr.f32.gmra.mxu0 %v340
          %v511 = vpop.f32.mrf.mxu0
          %v512 = vadd.f32 0.0, %v511
          %v513 = vpop.f32.mrf.mxu0
          %514 = vmatprep.mubr.f32.mxu0 0.0
          %515 = vmatmul.mubr.f32.gmra.mxu0 %v343
          %v516 = vpop.f32.mrf.mxu0
          %v517 = vadd.f32 0.0, %v516
          %v518 = vpop.f32.mrf.mxu0
          %519 = vmatprep.mubr.f32.mxu0 0.0
          %520 = vmatmul.mubr.f32.gmra.mxu0 %v346
          %v521 = vpop.f32.mrf.mxu0
          %v522 = vadd.f32 0.0, %v521
          %v523 = vpop.f32.mrf.mxu0
          %524 = vmatprep.mubr.f32.mxu0 0.0
          %525 = vmatmul.mubr.f32.gmra.mxu0 %v349
          %v526 = vpop.f32.mrf.mxu0
          %v527 = vadd.f32 0.0, %v526
          %v528 = vpop.f32.mrf.mxu0
          %529 = vmatprep.mubr.f32.mxu0 0.0
          %530 = vmatmul.mubr.f32.gmra.mxu0 %v352
          %v531 = vpop.f32.mrf.mxu0
          %v532 = vadd.f32 0.0, %v531
          %v533 = vpop.f32.mrf.mxu0
          %534 = vmatprep.mubr.f32.mxu0 0.0
          %535 = vmatmul.mubr.f32.gmra.mxu0 %v355
          %v536 = vpop.f32.mrf.mxu0
          %v537 = vadd.f32 0.0, %v536
          %v538 = vpop.f32.mrf.mxu0
          %539 = vmatprep.mubr.f32.mxu0 0.0
          %540 = vmatmul.mubr.f32.gmra.mxu0 %v358
          %v541 = vpop.f32.mrf.mxu0
          %v542 = vadd.f32 0.0, %v541
          %v543 = vpop.f32.mrf.mxu0
          %544 = vmatprep.mubr.f32.mxu0 0.0
          %545 = vmatmul.mubr.f32.gmra.mxu0 %v361
          %v546 = vpop.f32.mrf.mxu0
          %v547 = vadd.f32 0.0, %v546
          %v548 = vpop.f32.mrf.mxu0
          %549 = vmatprep.mubr.f32.mxu0 0.0
          %550 = vmatmul.mubr.f32.gmra.mxu0 %v364
          %v551 = vpop.f32.mrf.mxu0
          %v552 = vadd.f32 0.0, %v551
          %v553 = vpop.f32.mrf.mxu0
          %554 = vmatprep.mubr.f32.mxu0 0.0
          %555 = vmatmul.mubr.f32.gmra.mxu0 %v367
          %v556 = vpop.f32.mrf.mxu0
          %v557 = vadd.f32 0.0, %v556
          %v558 = vpop.f32.mrf.mxu0
          %559 = vmatprep.mubr.f32.mxu0 0.0
          %560 = vmatmul.mubr.f32.gmra.mxu0 %v370
          %v561 = vpop.f32.mrf.mxu0
          %v562 = vadd.f32 0.0, %v561
          %v563 = vpop.f32.mrf.mxu0
          %564 = vmatprep.mubr.f32.mxu0 0.0
          %565 = vmatmul.mubr.f32.gmra.mxu0 %v373
          %v566 = vpop.f32.mrf.mxu0
          %v567 = vadd.f32 0.0, %v566
          %v568 = vpop.f32.mrf.mxu0
          %569 = vmatprep.mubr.f32.mxu0 0.0
          %570 = vmatmul.mubr.f32.gmra.mxu0 %v376
          %v571 = vpop.f32.mrf.mxu0
          %v572 = vadd.f32 0.0, %v571
          %v573 = vpop.f32.mrf.mxu0
          %574 = vmatprep.mubr.f32.mxu0 0.0
          %575 = vmatmul.mubr.f32.gmra.mxu0 %v379
          %v576 = vpop.f32.mrf.mxu0
          %v577 = vadd.f32 0.0, %v576
          %v578 = vpop.f32.mrf.mxu0
          %579 = vmatprep.mubr.f32.mxu0 0.0
          %580 = vmatmul.mubr.f32.gmra.mxu0 %v382
          %v581 = vpop.f32.mrf.mxu0
          %v582 = vadd.f32 0.0, %v581
          %v583 = vpop.f32.mrf.mxu0
          %584 = vmatprep.mubr.f32.mxu0 0.0
          %585 = vmatmul.mubr.f32.gmra.mxu0 %v385
          %v586 = vpop.f32.mrf.mxu0
          %v587 = vadd.f32 0.0, %v586
          %v588 = vpop.f32.mrf.mxu0
          %589 = vmatprep.mubr.f32.mxu0 0.0
          %590 = vmatmul.mubr.f32.gmra.mxu0 %v388
          %v591 = vpop.f32.mrf.mxu0
          %v592 = vadd.f32 0.0, %v591
          %v593 = vpop.f32.mrf.mxu0
          %594 = vmatprep.mubr.f32.mxu0 0.0
          %595 = vmatmul.mubr.f32.gmra.mxu0 %v391
          %v596 = vpop.f32.mrf.mxu0
          %v597 = vadd.f32 0.0, %v596
          %v598 = vpop.f32.mrf.mxu0
          %599 = vmatprep.mubr.f32.mxu0 0.0
          %600 = vmatmul.mubr.f32.gmra.mxu0 %v394
          %v601 = vpop.f32.mrf.mxu0
          %v602 = vadd.f32 0.0, %v601
          %v603 = vpop.f32.mrf.mxu0
          %604 = vmatprep.mubr.f32.mxu0 0.0
          %605 = vmatmul.mubr.f32.gmra.mxu0 %v397
          %v606 = vpop.f32.mrf.mxu0
          %v607 = vadd.f32 0.0, %v606
          %v608 = vpop.f32.mrf.mxu0
          %609 = vmatprep.mubr.f32.mxu0 0.0
          %610 = vmatmul.mubr.f32.gmra.mxu0 %v400
          %v611 = vpop.f32.mrf.mxu0
          %v612 = vadd.f32 0.0, %v611
          %v613 = vpop.f32.mrf.mxu0
          %614 = vmatprep.mubr.f32.mxu0 0.0
          %615 = vmatmul.mubr.f32.gmra.mxu0 %v403
          %v616 = vpop.f32.mrf.mxu0
          %v617 = vadd.f32 0.0, %v616
          %v618 = vpop.f32.mrf.mxu0
          %619 = vmatprep.mubr.f32.mxu0 0.0
          %620 = vmatmul.mubr.f32.gmra.mxu0 %v406
          %v621 = vpop.f32.mrf.mxu0
          %v622 = vadd.f32 0.0, %v621
          %v623 = vpop.f32.mrf.mxu0
          %624 = vmatprep.mubr.f32.mxu0 0.0
          %625 = vmatmul.mubr.f32.gmra.mxu0 %v409
          %v626 = vpop.f32.mrf.mxu0
          %v627 = vadd.f32 0.0, %v626
          %v628 = vpop.f32.mrf.mxu0
          %629 = vmatprep.mubr.f32.mxu0 0.0
          %630 = vmatmul.mubr.f32.gmra.mxu0 %v412
          %v631 = vpop.f32.mrf.mxu0
          %v632 = vadd.f32 0.0, %v631
          %v633 = vpop.f32.mrf.mxu0
          %634 = vmatprep.mubr.f32.mxu0 0.0
          %635 = vmatmul.mubr.f32.gmra.mxu0 %v415
          %v636 = vpop.f32.mrf.mxu0
          %v637 = vadd.f32 0.0, %v636
          %v638 = vpop.f32.mrf.mxu0
          %639 = vmatprep.mubr.f32.mxu0 0.0
          %640 = vmatmul.mubr.f32.gmra.mxu0 %v418
          %v641 = vpop.f32.mrf.mxu0
          %v642 = vadd.f32 0.0, %v641
          %v643 = vpop.f32.mrf.mxu0
          %644 = vdwg.mxu0
          %v645 = vpack.c.bf16 %v492, %v487
          %v646 = vpack.c.bf16 %v502, %v497
          %v647 = vpack.c.bf16 %v512, %v507
          %v648 = vpack.c.bf16 %v522, %v517
          %v649 = vpack.c.bf16 %v532, %v527
          %v650 = vpack.c.bf16 %v542, %v537
          %v651 = vpack.c.bf16 %v552, %v547
          %v652 = vpack.c.bf16 %v562, %v557
          %v653 = vpack.c.bf16 %v572, %v567
          %v654 = vpack.c.bf16 %v582, %v577
          %v655 = vpack.c.bf16 %v592, %v587
          %v656 = vpack.c.bf16 %v602, %v597
          %v657 = vpack.c.bf16 %v612, %v607
          %v658 = vpack.c.bf16 %v622, %v617
          %v659 = vpack.c.bf16 %v632, %v627
          %v660 = vpack.c.bf16 %v642, %v637
          %v677 = vunpack.c.l.b16 %v645
          %v678 = vunpack.c.h.b16 %v645
          %v679 = vunpack.c.l.b16 %v646
          %v680 = vunpack.c.h.b16 %v646
          %v681 = vunpack.c.l.b16 %v647
          %v682 = vunpack.c.h.b16 %v647
          %v683 = vunpack.c.l.b16 %v648
          %v684 = vunpack.c.h.b16 %v648
          %v685 = vunpack.c.l.b16 %v649
          %v686 = vunpack.c.h.b16 %v649
          %v687 = vunpack.c.l.b16 %v650
          %v688 = vunpack.c.h.b16 %v650
          %v689 = vunpack.c.l.b16 %v651
          %v690 = vunpack.c.h.b16 %v651
          %v691 = vunpack.c.l.b16 %v652
          %v692 = vunpack.c.h.b16 %v652
          %v693 = vunpack.c.l.b16 %v653
          %v694 = vunpack.c.h.b16 %v653
          %v695 = vunpack.c.l.b16 %v654
          %v696 = vunpack.c.h.b16 %v654
          %v697 = vunpack.c.l.b16 %v655
          %v698 = vunpack.c.h.b16 %v655
          %v699 = vunpack.c.l.b16 %v656
          %v700 = vunpack.c.h.b16 %v656
          %v701 = vunpack.c.l.b16 %v657
          %v702 = vunpack.c.h.b16 %v657
          %v703 = vunpack.c.l.b16 %v658
          %v704 = vunpack.c.h.b16 %v658
          %v705 = vunpack.c.l.b16 %v659
          %v706 = vunpack.c.h.b16 %v659
          %v707 = vunpack.c.l.b16 %v660
          %v708 = vunpack.c.h.b16 %v660
          %v709 = vpack.c.b16 %v677, %v677
          %v710 = vpack.c.b16 %v678, %v678
          %v711 = vpack.c.b16 %v679, %v679
          %v712 = vpack.c.b16 %v680, %v680
          %v713 = vpack.c.b16 %v681, %v681
          %v714 = vpack.c.b16 %v682, %v682
          %v715 = vpack.c.b16 %v683, %v683
          %v716 = vpack.c.b16 %v684, %v684
          %v717 = vpack.c.b16 %v685, %v685
          %v718 = vpack.c.b16 %v686, %v686
          %v719 = vpack.c.b16 %v687, %v687
          %v720 = vpack.c.b16 %v688, %v688
          %v721 = vpack.c.b16 %v689, %v689
          %v722 = vpack.c.b16 %v690, %v690
          %v723 = vpack.c.b16 %v691, %v691
          %v724 = vpack.c.b16 %v692, %v692
          %v725 = vpack.c.b16 %v693, %v693
          %v726 = vpack.c.b16 %v694, %v694
          %v727 = vpack.c.b16 %v695, %v695
          %v728 = vpack.c.b16 %v696, %v696
          %v729 = vpack.c.b16 %v697, %v697
          %v730 = vpack.c.b16 %v698, %v698
          %v731 = vpack.c.b16 %v699, %v699
          %v732 = vpack.c.b16 %v700, %v700
          %v733 = vpack.c.b16 %v701, %v701
          %v734 = vpack.c.b16 %v702, %v702
          %v735 = vpack.c.b16 %v703, %v703
          %v736 = vpack.c.b16 %v704, %v704
          %v737 = vpack.c.b16 %v705, %v705
          %v738 = vpack.c.b16 %v706, %v706
          %v739 = vpack.c.b16 %v707, %v707
          %v740 = vpack.c.b16 %v708, %v708
          %773 = vst [vmem:[#allocation2] sm:$0xf] %v709
          %774 = vst [vmem:[#allocation2 + $0x4] sm:$0xf] %v710
          %775 = vst [vmem:[#allocation2 + $0x8] sm:$0xf] %v711
          %776 = vst [vmem:[#allocation2 + $0xc] sm:$0xf] %v712
          %777 = vst [vmem:[#allocation2 + $0x10] sm:$0xf] %v713
          %778 = vst [vmem:[#allocation2 + $0x14] sm:$0xf] %v714
          %779 = vst [vmem:[#allocation2 + $0x18] sm:$0xf] %v715
          %780 = vst [vmem:[#allocation2 + $0x1c] sm:$0xf] %v716
          %781 = vst [vmem:[#allocation2 + $0x20] sm:$0xf] %v717
          %782 = vst [vmem:[#allocation2 + $0x24] sm:$0xf] %v718
          %783 = vst [vmem:[#allocation2 + $0x28] sm:$0xf] %v719
          %784 = vst [vmem:[#allocation2 + $0x2c] sm:$0xf] %v720
          %785 = vst [vmem:[#allocation2 + $0x30] sm:$0xf] %v721
          %786 = vst [vmem:[#allocation2 + $0x34] sm:$0xf] %v722
          %787 = vst [vmem:[#allocation2 + $0x38] sm:$0xf] %v723
          %788 = vst [vmem:[#allocation2 + $0x3c] sm:$0xf] %v724
          %789 = vst [vmem:[#allocation2 + $0x40] sm:$0xf] %v725
          %790 = vst [vmem:[#allocation2 + $0x44] sm:$0xf] %v726
          %791 = vst [vmem:[#allocation2 + $0x48] sm:$0xf] %v727
          %792 = vst [vmem:[#allocation2 + $0x4c] sm:$0xf] %v728
          %793 = vst [vmem:[#allocation2 + $0x50] sm:$0xf] %v729
          %794 = vst [vmem:[#allocation2 + $0x54] sm:$0xf] %v730
          %795 = vst [vmem:[#allocation2 + $0x58] sm:$0xf] %v731
          %796 = vst [vmem:[#allocation2 + $0x5c] sm:$0xf] %v732
          %797 = vst [vmem:[#allocation2 + $0x60] sm:$0xf] %v733
          %798 = vst [vmem:[#allocation2 + $0x64] sm:$0xf] %v734
          %799 = vst [vmem:[#allocation2 + $0x68] sm:$0xf] %v735
          %800 = vst [vmem:[#allocation2 + $0x6c] sm:$0xf] %v736
          %801 = vst [vmem:[#allocation2 + $0x70] sm:$0xf] %v737
          %802 = vst [vmem:[#allocation2 + $0x74] sm:$0xf] %v738
          %803 = vst [vmem:[#allocation2 + $0x78] sm:$0xf] %v739
          %804 = vst [vmem:[#allocation2 + $0x7c] sm:$0xf] %v740
          %v805 = vld [vmem:[%s3] sm:$0xff]
          %v806 = vld [vmem:[%s3 + $0x8] sm:$0xff]
          %807 = vmatprep.subr.mxu0 0.0
          %808 = vmatpush1.msra.mxu0 0.0
          %809 = vmatprep.subr.mxu0 0.0
          %810 = vmatpush1.msra.mxu0 0.0
          %811 = vmatprep.subr.mxu0 0.0
          %812 = vmatpush1.msra.mxu0 0.0
          %813 = vmatprep.subr.mxu0 0.0
          %814 = vmatpush1.msra.mxu0 0.0
          %815 = vmatprep.subr.mxu0 0.0
          %816 = vmatpush1.msra.mxu0 0.0
          %817 = vmatprep.subr.mxu0 0.0
          %818 = vmatpush1.msra.mxu0 0.0
          %819 = vmatprep.subr.mxu0 0.0
          %820 = vmatpush1.msra.mxu0 0.0
          %821 = vmatprep.subr.mxu0 0.0
          %822 = vmatpush1.msra.mxu0 0.0
          %823 = vmatprep.subr.mxu0 0.0
          %824 = vmatpush1.msra.mxu0 0.0
          %825 = vmatprep.subr.mxu0 0.0
          %826 = vmatpush1.msra.mxu0 0.0
          %827 = vmatprep.subr.mxu0 0.0
          %828 = vmatpush1.msra.mxu0 0.0
          %829 = vmatprep.subr.mxu0 0.0
          %830 = vmatpush1.msra.mxu0 0.0
          %831 = vmatprep.subr.mxu0 0.0
          %832 = vmatpush1.msra.mxu0 0.0
          %833 = vmatprep.subr.mxu0 0.0
          %834 = vmatpush1.msra.mxu0 0.0
          %835 = vmatprep.subr.mxu0 0.0
          %836 = vmatpush1.msra.mxu0 %v806
          %837 = vmatprep.subr.mxu0 0.0
          %838 = vmatpush1.msra.mxu0 %v805
          %839 = vmatprep.subr.mxu0 0.0
          %840 = vmatpush2.msra.mxu0 0.0
          %841 = vmatprep.subr.mxu0 0.0
          %842 = vmatpush2.msra.mxu0 0.0
          %843 = vmatprep.subr.mxu0 0.0
          %844 = vmatpush2.msra.mxu0 0.0
          %845 = vmatprep.subr.mxu0 0.0
          %846 = vmatpush2.msra.mxu0 0.0
          %847 = vmatprep.subr.mxu0 0.0
          %848 = vmatpush2.msra.mxu0 0.0
          %849 = vmatprep.subr.mxu0 0.0
          %850 = vmatpush2.msra.mxu0 0.0
          %851 = vmatprep.subr.mxu0 0.0
          %852 = vmatpush2.msra.mxu0 0.0
          %853 = vmatprep.subr.mxu0 0.0
          %854 = vmatpush2.msra.mxu0 0.0
          %855 = vmatprep.subr.mxu0 0.0
          %856 = vmatpush2.msra.mxu0 0.0
          %857 = vmatprep.subr.mxu0 0.0
          %858 = vmatpush2.msra.mxu0 0.0
          %859 = vmatprep.subr.mxu0 0.0
          %860 = vmatpush2.msra.mxu0 0.0
          %861 = vmatprep.subr.mxu0 0.0
          %862 = vmatpush2.msra.mxu0 0.0
          %863 = vmatprep.subr.mxu0 0.0
          %864 = vmatpush2.msra.mxu0 0.0
          %865 = vmatprep.subr.mxu0 0.0
          %866 = vmatpush2.msra.mxu0 0.0
          %867 = vmatprep.subr.mxu0 0.0
          %868 = vmatpush2.msra.mxu0 0.0
          %869 = vmatprep.subr.mxu0 0.0
          %870 = vmatpush2.msra.mxu0 0.0
          %871 = vmatprep.mubr.f32.mxu0 0.0
          %872 = vmatmul.mubr.f32.gmra.mxu0 %v325
          %v873 = vpop.f32.mrf.mxu0
          %v874 = vadd.f32 0.0, %v873
          %v875 = vpop.f32.mrf.mxu0
          %876 = vmatprep.mubr.f32.mxu0 0.0
          %877 = vmatmul.mubr.f32.gmra.mxu0 %v328
          %v878 = vpop.f32.mrf.mxu0
          %v879 = vadd.f32 0.0, %v878
          %v880 = vpop.f32.mrf.mxu0
          %881 = vmatprep.mubr.f32.mxu0 0.0
          %882 = vmatmul.mubr.f32.gmra.mxu0 %v331
          %v883 = vpop.f32.mrf.mxu0
          %v884 = vadd.f32 0.0, %v883
          %v885 = vpop.f32.mrf.mxu0
          %886 = vmatprep.mubr.f32.mxu0 0.0
          %887 = vmatmul.mubr.f32.gmra.mxu0 %v334
          %v888 = vpop.f32.mrf.mxu0
          %v889 = vadd.f32 0.0, %v888
          %v890 = vpop.f32.mrf.mxu0
          %891 = vmatprep.mubr.f32.mxu0 0.0
          %892 = vmatmul.mubr.f32.gmra.mxu0 %v337
          %v893 = vpop.f32.mrf.mxu0
          %v894 = vadd.f32 0.0, %v893
          %v895 = vpop.f32.mrf.mxu0
          %896 = vmatprep.mubr.f32.mxu0 0.0
          %897 = vmatmul.mubr.f32.gmra.mxu0 %v340
          %v898 = vpop.f32.mrf.mxu0
          %v899 = vadd.f32 0.0, %v898
          %v900 = vpop.f32.mrf.mxu0
          %901 = vmatprep.mubr.f32.mxu0 0.0
          %902 = vmatmul.mubr.f32.gmra.mxu0 %v343
          %v903 = vpop.f32.mrf.mxu0
          %v904 = vadd.f32 0.0, %v903
          %v905 = vpop.f32.mrf.mxu0
          %906 = vmatprep.mubr.f32.mxu0 0.0
          %907 = vmatmul.mubr.f32.gmra.mxu0 %v346
          %v908 = vpop.f32.mrf.mxu0
          %v909 = vadd.f32 0.0, %v908
          %v910 = vpop.f32.mrf.mxu0
          %911 = vmatprep.mubr.f32.mxu0 0.0
          %912 = vmatmul.mubr.f32.gmra.mxu0 %v349
          %v913 = vpop.f32.mrf.mxu0
          %v914 = vadd.f32 0.0, %v913
          %v915 = vpop.f32.mrf.mxu0
          %916 = vmatprep.mubr.f32.mxu0 0.0
          %917 = vmatmul.mubr.f32.gmra.mxu0 %v352
          %v918 = vpop.f32.mrf.mxu0
          %v919 = vadd.f32 0.0, %v918
          %v920 = vpop.f32.mrf.mxu0
          %921 = vmatprep.mubr.f32.mxu0 0.0
          %922 = vmatmul.mubr.f32.gmra.mxu0 %v355
          %v923 = vpop.f32.mrf.mxu0
          %v924 = vadd.f32 0.0, %v923
          %v925 = vpop.f32.mrf.mxu0
          %926 = vmatprep.mubr.f32.mxu0 0.0
          %927 = vmatmul.mubr.f32.gmra.mxu0 %v358
          %v928 = vpop.f32.mrf.mxu0
          %v929 = vadd.f32 0.0, %v928
          %v930 = vpop.f32.mrf.mxu0
          %931 = vmatprep.mubr.f32.mxu0 0.0
          %932 = vmatmul.mubr.f32.gmra.mxu0 %v361
          %v933 = vpop.f32.mrf.mxu0
          %v934 = vadd.f32 0.0, %v933
          %v935 = vpop.f32.mrf.mxu0
          %936 = vmatprep.mubr.f32.mxu0 0.0
          %937 = vmatmul.mubr.f32.gmra.mxu0 %v364
          %v938 = vpop.f32.mrf.mxu0
          %v939 = vadd.f32 0.0, %v938
          %v940 = vpop.f32.mrf.mxu0
          %941 = vmatprep.mubr.f32.mxu0 0.0
          %942 = vmatmul.mubr.f32.gmra.mxu0 %v367
          %v943 = vpop.f32.mrf.mxu0
          %v944 = vadd.f32 0.0, %v943
          %v945 = vpop.f32.mrf.mxu0
          %946 = vmatprep.mubr.f32.mxu0 0.0
          %947 = vmatmul.mubr.f32.gmra.mxu0 %v370
          %v948 = vpop.f32.mrf.mxu0
          %v949 = vadd.f32 0.0, %v948
          %v950 = vpop.f32.mrf.mxu0
          %951 = vmatprep.mubr.f32.mxu0 0.0
          %952 = vmatmul.mubr.f32.gmra.mxu0 %v373
          %v953 = vpop.f32.mrf.mxu0
          %v954 = vadd.f32 0.0, %v953
          %v955 = vpop.f32.mrf.mxu0
          %956 = vmatprep.mubr.f32.mxu0 0.0
          %957 = vmatmul.mubr.f32.gmra.mxu0 %v376
          %v958 = vpop.f32.mrf.mxu0
          %v959 = vadd.f32 0.0, %v958
          %v960 = vpop.f32.mrf.mxu0
          %961 = vmatprep.mubr.f32.mxu0 0.0
          %962 = vmatmul.mubr.f32.gmra.mxu0 %v379
          %v963 = vpop.f32.mrf.mxu0
          %v964 = vadd.f32 0.0, %v963
          %v965 = vpop.f32.mrf.mxu0
          %966 = vmatprep.mubr.f32.mxu0 0.0
          %967 = vmatmul.mubr.f32.gmra.mxu0 %v382
          %v968 = vpop.f32.mrf.mxu0
          %v969 = vadd.f32 0.0, %v968
          %v970 = vpop.f32.mrf.mxu0
          %971 = vmatprep.mubr.f32.mxu0 0.0
          %972 = vmatmul.mubr.f32.gmra.mxu0 %v385
          %v973 = vpop.f32.mrf.mxu0
          %v974 = vadd.f32 0.0, %v973
          %v975 = vpop.f32.mrf.mxu0
          %976 = vmatprep.mubr.f32.mxu0 0.0
          %977 = vmatmul.mubr.f32.gmra.mxu0 %v388
          %v978 = vpop.f32.mrf.mxu0
          %v979 = vadd.f32 0.0, %v978
          %v980 = vpop.f32.mrf.mxu0
          %981 = vmatprep.mubr.f32.mxu0 0.0
          %982 = vmatmul.mubr.f32.gmra.mxu0 %v391
          %v983 = vpop.f32.mrf.mxu0
          %v984 = vadd.f32 0.0, %v983
          %v985 = vpop.f32.mrf.mxu0
          %986 = vmatprep.mubr.f32.mxu0 0.0
          %987 = vmatmul.mubr.f32.gmra.mxu0 %v394
          %v988 = vpop.f32.mrf.mxu0
          %v989 = vadd.f32 0.0, %v988
          %v990 = vpop.f32.mrf.mxu0
          %991 = vmatprep.mubr.f32.mxu0 0.0
          %992 = vmatmul.mubr.f32.gmra.mxu0 %v397
          %v993 = vpop.f32.mrf.mxu0
          %v994 = vadd.f32 0.0, %v993
          %v995 = vpop.f32.mrf.mxu0
          %996 = vmatprep.mubr.f32.mxu0 0.0
          %997 = vmatmul.mubr.f32.gmra.mxu0 %v400
          %v998 = vpop.f32.mrf.mxu0
          %v999 = vadd.f32 0.0, %v998
          %v1000 = vpop.f32.mrf.mxu0
          %1001 = vmatprep.mubr.f32.mxu0 0.0
          %1002 = vmatmul.mubr.f32.gmra.mxu0 %v403
          %v1003 = vpop.f32.mrf.mxu0
          %v1004 = vadd.f32 0.0, %v1003
          %v1005 = vpop.f32.mrf.mxu0
          %1006 = vmatprep.mubr.f32.mxu0 0.0
          %1007 = vmatmul.mubr.f32.gmra.mxu0 %v406
          %v1008 = vpop.f32.mrf.mxu0
          %v1009 = vadd.f32 0.0, %v1008
          %v1010 = vpop.f32.mrf.mxu0
          %1011 = vmatprep.mubr.f32.mxu0 0.0
          %1012 = vmatmul.mubr.f32.gmra.mxu0 %v409
          %v1013 = vpop.f32.mrf.mxu0
          %v1014 = vadd.f32 0.0, %v1013
          %v1015 = vpop.f32.mrf.mxu0
          %1016 = vmatprep.mubr.f32.mxu0 0.0
          %1017 = vmatmul.mubr.f32.gmra.mxu0 %v412
          %v1018 = vpop.f32.mrf.mxu0
          %v1019 = vadd.f32 0.0, %v1018
          %v1020 = vpop.f32.mrf.mxu0
          %1021 = vmatprep.mubr.f32.mxu0 0.0
          %1022 = vmatmul.mubr.f32.gmra.mxu0 %v415
          %v1023 = vpop.f32.mrf.mxu0
          %v1024 = vadd.f32 0.0, %v1023
          %v1025 = vpop.f32.mrf.mxu0
          %1026 = vmatprep.mubr.f32.mxu0 0.0
          %1027 = vmatmul.mubr.f32.gmra.mxu0 %v418
          %v1028 = vpop.f32.mrf.mxu0
          %v1029 = vadd.f32 0.0, %v1028
          %v1030 = vpop.f32.mrf.mxu0
          %1031 = vdwg.mxu0
          %vm1032 = vcmask 7168
          %1033 = vst.msk [vmem:[#allocation3] sm:$0xff] %vm1032, %v874
          %1034 = vst.msk [vmem:[#allocation3 + $0x8] sm:$0xff] %vm1032, %v879
          %1035 = vst.msk [vmem:[#allocation3 + $0x10] sm:$0xff] %vm1032, %v884
          %1036 = vst.msk [vmem:[#allocation3 + $0x18] sm:$0xff] %vm1032, %v889
          %1037 = vst.msk [vmem:[#allocation3 + $0x20] sm:$0xff] %vm1032, %v894
          %1038 = vst.msk [vmem:[#allocation3 + $0x28] sm:$0xff] %vm1032, %v899
          %1039 = vst.msk [vmem:[#allocation3 + $0x30] sm:$0xff] %vm1032, %v904
          %1040 = vst.msk [vmem:[#allocation3 + $0x38] sm:$0xff] %vm1032, %v909
          %1041 = vst.msk [vmem:[#allocation3 + $0x40] sm:$0xff] %vm1032, %v914
          %1042 = vst.msk [vmem:[#allocation3 + $0x48] sm:$0xff] %vm1032, %v919
          %1043 = vst.msk [vmem:[#allocation3 + $0x50] sm:$0xff] %vm1032, %v924
          %1044 = vst.msk [vmem:[#allocation3 + $0x58] sm:$0xff] %vm1032, %v929
          %1045 = vst.msk [vmem:[#allocation3 + $0x60] sm:$0xff] %vm1032, %v934
          %1046 = vst.msk [vmem:[#allocation3 + $0x68] sm:$0xff] %vm1032, %v939
          %1047 = vst.msk [vmem:[#allocation3 + $0x70] sm:$0xff] %vm1032, %v944
          %1048 = vst.msk [vmem:[#allocation3 + $0x78] sm:$0xff] %vm1032, %v949
          %1049 = vst.msk [vmem:[#allocation3 + $0x80] sm:$0xff] %vm1032, %v954
          %1050 = vst.msk [vmem:[#allocation3 + $0x88] sm:$0xff] %vm1032, %v959
          %1051 = vst.msk [vmem:[#allocation3 + $0x90] sm:$0xff] %vm1032, %v964
          %1052 = vst.msk [vmem:[#allocation3 + $0x98] sm:$0xff] %vm1032, %v969
          %1053 = vst.msk [vmem:[#allocation3 + $0xa0] sm:$0xff] %vm1032, %v974
          %1054 = vst.msk [vmem:[#allocation3 + $0xa8] sm:$0xff] %vm1032, %v979
          %1055 = vst.msk [vmem:[#allocation3 + $0xb0] sm:$0xff] %vm1032, %v984
          %1056 = vst.msk [vmem:[#allocation3 + $0xb8] sm:$0xff] %vm1032, %v989
          %1057 = vst.msk [vmem:[#allocation3 + $0xc0] sm:$0xff] %vm1032, %v994
          %1058 = vst.msk [vmem:[#allocation3 + $0xc8] sm:$0xff] %vm1032, %v999
          %1059 = vst.msk [vmem:[#allocation3 + $0xd0] sm:$0xff] %vm1032, %v1004
          %1060 = vst.msk [vmem:[#allocation3 + $0xd8] sm:$0xff] %vm1032, %v1009
          %1061 = vst.msk [vmem:[#allocation3 + $0xe0] sm:$0xff] %vm1032, %v1014
          %1062 = vst.msk [vmem:[#allocation3 + $0xe8] sm:$0xff] %vm1032, %v1019
          %1063 = vst.msk [vmem:[#allocation3 + $0xf0] sm:$0xff] %vm1032, %v1024
          %1064 = vst.msk [vmem:[#allocation3 + $0xf8] sm:$0xff] %vm1032, %v1029
          %v1065 = vld [vmem:[%s4] sm:$0xff]
          %v1066 = vld [vmem:[%s4 + $0x8] sm:$0xff]
          %v1067 = vld [vmem:[%s1] sm:$0xff]
          %v1068 = vld [vmem:[%s1 + $0x8] sm:$0xff]
          %v1069 = vld [vmem:[%s1 + $0x10] sm:$0xff]
          %v1070 = vld [vmem:[%s1 + $0x18] sm:$0xff]
          %1072 = vset.pattern.permute.xlu0 0
          %1073 = vperm.xlu0 %1072, %v1065
          %v1074 = vpop.permute.xlu0 %1073
          %1077 = vset.pattern.permute.xlu0 0
          %1078 = vperm.xlu0 %1077, %v1066
          %v1079 = vpop.permute.xlu0 %1078
          %v1081 = vmul.f32 %v1074, %v1067
          %v1082 = vmul.f32 %v1074, %v1068
          %v1083 = vmul.f32 %v1079, %v1069
          %v1084 = vmul.f32 %v1079, %v1070
          %v1085 = vadd.f32 %v1081, %v1083
          %v1086 = vrot.slane %v1085, 4
          %v1087 = vadd.f32 %v1085, %v1086
          %v1088 = vrot.slane %v1087, 2
          %v1089 = vadd.f32 %v1087, %v1088
          %v1090 = vrot.slane %v1089, 1
          %v1091 = vadd.f32 %v1089, %v1090
          %v1092 = vadd.f32 %v1082, %v1084
          %v1093 = vrot.slane %v1092, 4
          %v1094 = vadd.f32 %v1092, %v1093
          %v1095 = vrot.slane %v1094, 2
          %v1096 = vadd.f32 %v1094, %v1095
          %v1097 = vrot.slane %v1096, 1
          %v1098 = vadd.f32 %v1096, %v1097
          %v1101 = vcombine.low %v1091, %v1098
          %v1103 = vunpack.c.l.s4 1966171168
          %v1104 = vunpack.c.0.s8 %v1103
          %v1105 = vlaneseq
          %v1106 = vshrl.u32 %v1105, 7
          %v1107 = vsub.s32 %v1104, %v1106
          %v1108 = vrot.slane %v1101, %v1107
          %v1110 = vunpack.c.l.s4 1966171168
          %v1111 = vunpack.c.0.s8 %v1110
          %v1112 = vlaneseq
          %v1113 = vshrl.u32 %v1112, 7
          %v1114 = vsub.s32 %v1111, %v1113
          %v1115 = vrot.slane %v1108, %v1114
          %v1117 = vlaneseq
          %vm1118 = vcmp.ge.s32.totalorder %v1117, 0
          %vm1119 = vcmp.lt.s32.totalorder %v1117, 256
          %vm1120 = vmand %vm1118, %vm1119
          %1121 = vst.msk [vmem:[#allocation4] sm:$0x3] %vm1120, %v1115
          %1122 = vst.msk [vmem:[#allocation5] sm:$0xff] %vm1032, 0.0
          %1123 = vst.msk [vmem:[#allocation5 + $0x8] sm:$0xff] %vm1032, 0.0
          %1124 = vst.msk [vmem:[#allocation5 + $0x10] sm:$0xff] %vm1032, 0.0
          %1125 = vst.msk [vmem:[#allocation5 + $0x18] sm:$0xff] %vm1032, 0.0
          %1126 = vst.msk [vmem:[#allocation5 + $0x20] sm:$0xff] %vm1032, 0.0
          %1127 = vst.msk [vmem:[#allocation5 + $0x28] sm:$0xff] %vm1032, 0.0
          %1128 = vst.msk [vmem:[#allocation5 + $0x30] sm:$0xff] %vm1032, 0.0
          %1129 = vst.msk [vmem:[#allocation5 + $0x38] sm:$0xff] %vm1032, 0.0
          %1130 = vst.msk [vmem:[#allocation5 + $0x40] sm:$0xff] %vm1032, 0.0
          %1131 = vst.msk [vmem:[#allocation5 + $0x48] sm:$0xff] %vm1032, 0.0
          %1132 = vst.msk [vmem:[#allocation5 + $0x50] sm:$0xff] %vm1032, 0.0
          %1133 = vst.msk [vmem:[#allocation5 + $0x58] sm:$0xff] %vm1032, 0.0
          %1134 = vst.msk [vmem:[#allocation5 + $0x60] sm:$0xff] %vm1032, 0.0
          %1135 = vst.msk [vmem:[#allocation5 + $0x68] sm:$0xff] %vm1032, 0.0
          %1136 = vst.msk [vmem:[#allocation5 + $0x70] sm:$0xff] %vm1032, 0.0
          %1137 = vst.msk [vmem:[#allocation5 + $0x78] sm:$0xff] %vm1032, 0.0
          %1138 = vst [vmem:[%s270] sm:$0xff] 0.0
          %1139 = vst [vmem:[%s270 + $0x8] sm:$0xff] 0.0
          %1140 = vst [vmem:[%s270 + $0x10] sm:$0xff] 0.0
          %1141 = vst [vmem:[%s270 + $0x18] sm:$0xff] 0.0
          %1142 = vst [vmem:[%s270 + $0x20] sm:$0xff] 0.0
          %1143 = vst [vmem:[%s270 + $0x28] sm:$0xff] 0.0
          %1144 = vst [vmem:[%s270 + $0x30] sm:$0xff] 0.0
          %1145 = vst [vmem:[%s270 + $0x38] sm:$0xff] 0.0
          %1146 = vst [vmem:[%s270 + $0x40] sm:$0xff] 0.0
          %1147 = vst [vmem:[%s270 + $0x48] sm:$0xff] 0.0
          %1148 = vst [vmem:[%s270 + $0x50] sm:$0xff] 0.0
          %1149 = vst [vmem:[%s270 + $0x58] sm:$0xff] 0.0
          %1150 = vst [vmem:[%s270 + $0x60] sm:$0xff] 0.0
          %1151 = vst [vmem:[%s270 + $0x68] sm:$0xff] 0.0
          %1152 = vst [vmem:[%s270 + $0x70] sm:$0xff] 0.0
          %1153 = vst [vmem:[%s270 + $0x78] sm:$0xff] 0.0
        $region48: #{tpu_custom_call.1} parent=43 // pred_fallthru
          _
        %s1154 = smul.u32 %s24, 128
        %s1155 = smul.u32 %s25, 256
        %s1156 = scalar_lea.vmem [#allocation3], %s1154
        %v1157 = vld [vmem:[%s1156] sm:$0xff]
        %v1158 = vld [vmem:[%s1156 + $0x8] sm:$0xff]
        %v1159 = vld [vmem:[%s1156 + $0x10] sm:$0xff]
        %v1160 = vld [vmem:[%s1156 + $0x18] sm:$0xff]
        %v1161 = vld [vmem:[%s1156 + $0x20] sm:$0xff]
        %v1162 = vld [vmem:[%s1156 + $0x28] sm:$0xff]
        %v1163 = vld [vmem:[%s1156 + $0x30] sm:$0xff]
        %v1164 = vld [vmem:[%s1156 + $0x38] sm:$0xff]
        %v1165 = vld [vmem:[%s1156 + $0x40] sm:$0xff]
        %v1166 = vld [vmem:[%s1156 + $0x48] sm:$0xff]
        %v1167 = vld [vmem:[%s1156 + $0x50] sm:$0xff]
        %v1168 = vld [vmem:[%s1156 + $0x58] sm:$0xff]
        %v1169 = vld [vmem:[%s1156 + $0x60] sm:$0xff]
        %v1170 = vld [vmem:[%s1156 + $0x68] sm:$0xff]
        %v1171 = vld [vmem:[%s1156 + $0x70] sm:$0xff]
        %v1172 = vld [vmem:[%s1156 + $0x78] sm:$0xff]
        %s1173 = sshra.s32 %s1155, 7
        %s1174 = sand.u32 %s1155, 127
        %s1175 = scalar_lea.vmem [#allocation4], %s1173
        %v1176 = vld [vmem:[%s1175] sm:$0x3]
        %s1177 = sshra.s32 %s1155, 3
        %s1178 = sand.u32 %s1155, 7
        %s1179 = smul.addr %s1177, 4
        %s1180 = scalar_lea.vmem [#allocation2], %s1179
        %v1181 = vld [vmem:[%s1180] sm:$0xf]
        %v1182 = vld [vmem:[%s1180 + $0x4] sm:$0xf]
        %v1183 = vld [vmem:[%s1180 + $0x8] sm:$0xf]
        %v1184 = vld [vmem:[%s1180 + $0xc] sm:$0xf]
        %v1185 = vld [vmem:[%s1180 + $0x10] sm:$0xf]
        %v1186 = vld [vmem:[%s1180 + $0x14] sm:$0xf]
        %v1187 = vld [vmem:[%s1180 + $0x18] sm:$0xf]
        %v1188 = vld [vmem:[%s1180 + $0x1c] sm:$0xf]
        %v1189 = vld [vmem:[%s1180 + $0x20] sm:$0xf]
        %v1190 = vld [vmem:[%s1180 + $0x24] sm:$0xf]
        %v1191 = vld [vmem:[%s1180 + $0x28] sm:$0xf]
        %v1192 = vld [vmem:[%s1180 + $0x2c] sm:$0xf]
        %v1193 = vld [vmem:[%s1180 + $0x30] sm:$0xf]
        %v1194 = vld [vmem:[%s1180 + $0x34] sm:$0xf]
        %v1195 = vld [vmem:[%s1180 + $0x38] sm:$0xf]
        %v1196 = vld [vmem:[%s1180 + $0x3c] sm:$0xf]
        %v1197 = vld [vmem:[%s1180 + $0x40] sm:$0xf]
        %v1198 = vld [vmem:[%s1180 + $0x44] sm:$0xf]
        %v1199 = vld [vmem:[%s1180 + $0x48] sm:$0xf]
        %v1200 = vld [vmem:[%s1180 + $0x4c] sm:$0xf]
        %v1201 = vld [vmem:[%s1180 + $0x50] sm:$0xf]
        %v1202 = vld [vmem:[%s1180 + $0x54] sm:$0xf]
        %v1203 = vld [vmem:[%s1180 + $0x58] sm:$0xf]
        %v1204 = vld [vmem:[%s1180 + $0x5c] sm:$0xf]
        %v1205 = vld [vmem:[%s1180 + $0x60] sm:$0xf]
        %v1206 = vld [vmem:[%s1180 + $0x64] sm:$0xf]
        %v1207 = vld [vmem:[%s1180 + $0x68] sm:$0xf]
        %v1208 = vld [vmem:[%s1180 + $0x6c] sm:$0xf]
        %v1209 = vld [vmem:[%s1180 + $0x70] sm:$0xf]
        %v1210 = vld [vmem:[%s1180 + $0x74] sm:$0xf]
        %v1211 = vld [vmem:[%s1180 + $0x78] sm:$0xf]
        %v1212 = vld [vmem:[%s1180 + $0x7c] sm:$0xf]
        %1214 = vset.pattern.permute.xlu0 0
        %1215 = vperm.xlu0 %1214, %v1157
        %v1216 = vpop.permute.xlu0 %1215
        %1219 = vset.pattern.permute.xlu0 0
        %1220 = vperm.xlu0 %1219, %v1158
        %v1221 = vpop.permute.xlu0 %1220
        %1224 = vset.pattern.permute.xlu0 0
        %1225 = vperm.xlu0 %1224, %v1159
        %v1226 = vpop.permute.xlu0 %1225
        %1229 = vset.pattern.permute.xlu0 0
        %1230 = vperm.xlu0 %1229, %v1160
        %v1231 = vpop.permute.xlu0 %1230
        %1234 = vset.pattern.permute.xlu0 0
        %1235 = vperm.xlu0 %1234, %v1161
        %v1236 = vpop.permute.xlu0 %1235
        %1239 = vset.pattern.permute.xlu0 0
        %1240 = vperm.xlu0 %1239, %v1162
        %v1241 = vpop.permute.xlu0 %1240
        %1244 = vset.pattern.permute.xlu0 0
        %1245 = vperm.xlu0 %1244, %v1163
        %v1246 = vpop.permute.xlu0 %1245
        %1249 = vset.pattern.permute.xlu0 0
        %1250 = vperm.xlu0 %1249, %v1164
        %v1251 = vpop.permute.xlu0 %1250
        %1254 = vset.pattern.permute.xlu0 0
        %1255 = vperm.xlu0 %1254, %v1165
        %v1256 = vpop.permute.xlu0 %1255
        %1259 = vset.pattern.permute.xlu0 0
        %1260 = vperm.xlu0 %1259, %v1166
        %v1261 = vpop.permute.xlu0 %1260
        %1264 = vset.pattern.permute.xlu0 0
        %1265 = vperm.xlu0 %1264, %v1167
        %v1266 = vpop.permute.xlu0 %1265
        %1269 = vset.pattern.permute.xlu0 0
        %1270 = vperm.xlu0 %1269, %v1168
        %v1271 = vpop.permute.xlu0 %1270
        %1274 = vset.pattern.permute.xlu0 0
        %1275 = vperm.xlu0 %1274, %v1169
        %v1276 = vpop.permute.xlu0 %1275
        %1279 = vset.pattern.permute.xlu0 0
        %1280 = vperm.xlu0 %1279, %v1170
        %v1281 = vpop.permute.xlu0 %1280
        %1284 = vset.pattern.permute.xlu0 0
        %1285 = vperm.xlu0 %1284, %v1171
        %v1286 = vpop.permute.xlu0 %1285
        %1289 = vset.pattern.permute.xlu0 0
        %1290 = vperm.xlu0 %1289, %v1172
        %v1291 = vpop.permute.xlu0 %1290
        %v1294 = vlaneseq
        %v1295 = vshrl.u32 %v1294, 7
        %v1296 = vsub.s32 0, %v1295
        %v1297 = vrot.slane %v1176, %v1296
        %v1298 = vlaneseq
        %v1299 = vshrl.u32 %v1298, 7
        %v1300 = vsub.s32 1, %v1299
        %v1301 = vrot.slane %v1176, %v1300
        %v1304 = vadd.f32 %v1216, %v1297
        %v1305 = vadd.f32 %v1216, %v1301
        %v1306 = vadd.f32 %v1221, %v1297
        %v1307 = vadd.f32 %v1221, %v1301
        %v1308 = vadd.f32 %v1226, %v1297
        %v1309 = vadd.f32 %v1226, %v1301
        %v1310 = vadd.f32 %v1231, %v1297
        %v1311 = vadd.f32 %v1231, %v1301
        %v1312 = vadd.f32 %v1236, %v1297
        %v1313 = vadd.f32 %v1236, %v1301
        %v1314 = vadd.f32 %v1241, %v1297
        %v1315 = vadd.f32 %v1241, %v1301
        %v1316 = vadd.f32 %v1246, %v1297
        %v1317 = vadd.f32 %v1246, %v1301
        %v1318 = vadd.f32 %v1251, %v1297
        %v1319 = vadd.f32 %v1251, %v1301
        %v1320 = vadd.f32 %v1256, %v1297
        %v1321 = vadd.f32 %v1256, %v1301
        %v1322 = vadd.f32 %v1261, %v1297
        %v1323 = vadd.f32 %v1261, %v1301
        %v1324 = vadd.f32 %v1266, %v1297
        %v1325 = vadd.f32 %v1266, %v1301
        %v1326 = vadd.f32 %v1271, %v1297
        %v1327 = vadd.f32 %v1271, %v1301
        %v1328 = vadd.f32 %v1276, %v1297
        %v1329 = vadd.f32 %v1276, %v1301
        %v1330 = vadd.f32 %v1281, %v1297
        %v1331 = vadd.f32 %v1281, %v1301
        %v1332 = vadd.f32 %v1286, %v1297
        %v1333 = vadd.f32 %v1286, %v1301
        %v1334 = vadd.f32 %v1291, %v1297
        %v1335 = vadd.f32 %v1291, %v1301
        %v1336 = vld [vmem:[%s280] sm:$0xff]
        %v1337 = vld [vmem:[%s280 + $0x8] sm:$0xff]
        %v1338 = vld [vmem:[%s280 + $0x10] sm:$0xff]
        %v1339 = vld [vmem:[%s280 + $0x18] sm:$0xff]
        %v1340 = vld [vmem:[%s280 + $0x20] sm:$0xff]
        %v1341 = vld [vmem:[%s280 + $0x28] sm:$0xff]
        %v1342 = vld [vmem:[%s280 + $0x30] sm:$0xff]
        %v1343 = vld [vmem:[%s280 + $0x38] sm:$0xff]
        %v1344 = vunpack.c.0.s8 %v1336
        %v1345 = vunpack.c.0.s8 %v1337
        %v1346 = vunpack.c.1.s8 %v1336
        %v1347 = vunpack.c.1.s8 %v1337
        %v1348 = vunpack.c.2.s8 %v1336
        %v1349 = vunpack.c.2.s8 %v1337
        %v1350 = vunpack.c.3.s8 %v1336
        %v1351 = vunpack.c.3.s8 %v1337
        %v1352 = vunpack.c.0.s8 %v1338
        %v1353 = vunpack.c.0.s8 %v1339
        %v1354 = vunpack.c.1.s8 %v1338
        %v1355 = vunpack.c.1.s8 %v1339
        %v1356 = vunpack.c.2.s8 %v1338
        %v1357 = vunpack.c.2.s8 %v1339
        %v1358 = vunpack.c.3.s8 %v1338
        %v1359 = vunpack.c.3.s8 %v1339
        %v1360 = vunpack.c.0.s8 %v1340
        %v1361 = vunpack.c.0.s8 %v1341
        %v1362 = vunpack.c.1.s8 %v1340
        %v1363 = vunpack.c.1.s8 %v1341
        %v1364 = vunpack.c.2.s8 %v1340
        %v1365 = vunpack.c.2.s8 %v1341
        %v1366 = vunpack.c.3.s8 %v1340
        %v1367 = vunpack.c.3.s8 %v1341
        %v1368 = vunpack.c.0.s8 %v1342
        %v1369 = vunpack.c.0.s8 %v1343
        %v1370 = vunpack.c.1.s8 %v1342
        %v1371 = vunpack.c.1.s8 %v1343
        %v1372 = vunpack.c.2.s8 %v1342
        %v1373 = vunpack.c.2.s8 %v1343
        %v1374 = vunpack.c.3.s8 %v1342
        %v1375 = vunpack.c.3.s8 %v1343
        %v1376 = vcvt.s32.f32 %v1344
        %v1377 = vcvt.s32.f32 %v1345
        %v1378 = vcvt.s32.f32 %v1346
        %v1379 = vcvt.s32.f32 %v1347
        %v1380 = vcvt.s32.f32 %v1348
        %v1381 = vcvt.s32.f32 %v1349
        %v1382 = vcvt.s32.f32 %v1350
        %v1383 = vcvt.s32.f32 %v1351
        %v1384 = vcvt.s32.f32 %v1352
        %v1385 = vcvt.s32.f32 %v1353
        %v1386 = vcvt.s32.f32 %v1354
        %v1387 = vcvt.s32.f32 %v1355
        %v1388 = vcvt.s32.f32 %v1356
        %v1389 = vcvt.s32.f32 %v1357
        %v1390 = vcvt.s32.f32 %v1358
        %v1391 = vcvt.s32.f32 %v1359
        %v1392 = vcvt.s32.f32 %v1360
        %v1393 = vcvt.s32.f32 %v1361
        %v1394 = vcvt.s32.f32 %v1362
        %v1395 = vcvt.s32.f32 %v1363
        %v1396 = vcvt.s32.f32 %v1364
        %v1397 = vcvt.s32.f32 %v1365
        %v1398 = vcvt.s32.f32 %v1366
        %v1399 = vcvt.s32.f32 %v1367
        %v1400 = vcvt.s32.f32 %v1368
        %v1401 = vcvt.s32.f32 %v1369
        %v1402 = vcvt.s32.f32 %v1370
        %v1403 = vcvt.s32.f32 %v1371
        %v1404 = vcvt.s32.f32 %v1372
        %v1405 = vcvt.s32.f32 %v1373
        %v1406 = vcvt.s32.f32 %v1374
        %v1407 = vcvt.s32.f32 %v1375
        %v1408 = vsub.f32 0.0, %v1304
        %v1409 = vsub.f32 0.0, %v1305
        %v1410 = vsub.f32 0.0, %v1306
        %v1411 = vsub.f32 0.0, %v1307
        %v1412 = vsub.f32 0.0, %v1308
        %v1413 = vsub.f32 0.0, %v1309
        %v1414 = vsub.f32 0.0, %v1310
        %v1415 = vsub.f32 0.0, %v1311
        %v1416 = vsub.f32 0.0, %v1312
        %v1417 = vsub.f32 0.0, %v1313
        %v1418 = vsub.f32 0.0, %v1314
        %v1419 = vsub.f32 0.0, %v1315
        %v1420 = vsub.f32 0.0, %v1316
        %v1421 = vsub.f32 0.0, %v1317
        %v1422 = vsub.f32 0.0, %v1318
        %v1423 = vsub.f32 0.0, %v1319
        %v1424 = vsub.f32 0.0, %v1320
        %v1425 = vsub.f32 0.0, %v1321
        %v1426 = vsub.f32 0.0, %v1322
        %v1427 = vsub.f32 0.0, %v1323
        %v1428 = vsub.f32 0.0, %v1324
        %v1429 = vsub.f32 0.0, %v1325
        %v1430 = vsub.f32 0.0, %v1326
        %v1431 = vsub.f32 0.0, %v1327
        %v1432 = vsub.f32 0.0, %v1328
        %v1433 = vsub.f32 0.0, %v1329
        %v1434 = vsub.f32 0.0, %v1330
        %v1435 = vsub.f32 0.0, %v1331
        %v1436 = vsub.f32 0.0, %v1332
        %v1437 = vsub.f32 0.0, %v1333
        %v1438 = vsub.f32 0.0, %v1334
        %v1439 = vsub.f32 0.0, %v1335
        %v1440 = vmul.f32 %v1304, -0.2
        %v1441 = vmul.f32 %v1305, -0.2
        %v1442 = vmul.f32 %v1306, -0.2
        %v1443 = vmul.f32 %v1307, -0.2
        %v1444 = vmul.f32 %v1308, -0.2
        %v1445 = vmul.f32 %v1309, -0.2
        %v1446 = vmul.f32 %v1310, -0.2
        %v1447 = vmul.f32 %v1311, -0.2
        %v1448 = vmul.f32 %v1312, -0.2
        %v1449 = vmul.f32 %v1313, -0.2
        %v1450 = vmul.f32 %v1314, -0.2
        %v1451 = vmul.f32 %v1315, -0.2
        %v1452 = vmul.f32 %v1316, -0.2
        %v1453 = vmul.f32 %v1317, -0.2
        %v1454 = vmul.f32 %v1318, -0.2
        %v1455 = vmul.f32 %v1319, -0.2
        %v1456 = vmul.f32 %v1320, -0.2
        %v1457 = vmul.f32 %v1321, -0.2
        %v1458 = vmul.f32 %v1322, -0.2
        %v1459 = vmul.f32 %v1323, -0.2
        %v1460 = vmul.f32 %v1324, -0.2
        %v1461 = vmul.f32 %v1325, -0.2
        %v1462 = vmul.f32 %v1326, -0.2
        %v1463 = vmul.f32 %v1327, -0.2
        %v1464 = vmul.f32 %v1328, -0.2
        %v1465 = vmul.f32 %v1329, -0.2
        %v1466 = vmul.f32 %v1330, -0.2
        %v1467 = vmul.f32 %v1331, -0.2
        %v1468 = vmul.f32 %v1332, -0.2
        %v1469 = vmul.f32 %v1333, -0.2
        %v1470 = vmul.f32 %v1334, -0.2
        %v1471 = vmul.f32 %v1335, -0.2
        %v1472 = vmin.f32 %v1408, %v1440
        %v1473 = vmin.f32 %v1409, %v1441
        %v1474 = vmin.f32 %v1410, %v1442
        %v1475 = vmin.f32 %v1411, %v1443
        %v1476 = vmin.f32 %v1412, %v1444
        %v1477 = vmin.f32 %v1413, %v1445
        %v1478 = vmin.f32 %v1414, %v1446
        %v1479 = vmin.f32 %v1415, %v1447
        %v1480 = vmin.f32 %v1416, %v1448
        %v1481 = vmin.f32 %v1417, %v1449
        %v1482 = vmin.f32 %v1418, %v1450
        %v1483 = vmin.f32 %v1419, %v1451
        %v1484 = vmin.f32 %v1420, %v1452
        %v1485 = vmin.f32 %v1421, %v1453
        %v1486 = vmin.f32 %v1422, %v1454
        %v1487 = vmin.f32 %v1423, %v1455
        %v1488 = vmin.f32 %v1424, %v1456
        %v1489 = vmin.f32 %v1425, %v1457
        %v1490 = vmin.f32 %v1426, %v1458
        %v1491 = vmin.f32 %v1427, %v1459
        %v1492 = vmin.f32 %v1428, %v1460
        %v1493 = vmin.f32 %v1429, %v1461
        %v1494 = vmin.f32 %v1430, %v1462
        %v1495 = vmin.f32 %v1431, %v1463
        %v1496 = vmin.f32 %v1432, %v1464
        %v1497 = vmin.f32 %v1433, %v1465
        %v1498 = vmin.f32 %v1434, %v1466
        %v1499 = vmin.f32 %v1435, %v1467
        %v1500 = vmin.f32 %v1436, %v1468
        %v1501 = vmin.f32 %v1437, %v1469
        %v1502 = vmin.f32 %v1438, %v1470
        %v1503 = vmin.f32 %v1439, %v1471
        %v1504 = vmul.f32 %v1472, 1.442695
        %v1505 = vpow.pop %v1504
        %v1506 = vmul.f32 %v1473, 1.442695
        %v1507 = vpow.pop %v1506
        %v1508 = vmul.f32 %v1474, 1.442695
        %v1509 = vpow.pop %v1508
        %v1510 = vmul.f32 %v1475, 1.442695
        %v1511 = vpow.pop %v1510
        %v1512 = vmul.f32 %v1476, 1.442695
        %v1513 = vpow.pop %v1512
        %v1514 = vmul.f32 %v1477, 1.442695
        %v1515 = vpow.pop %v1514
        %v1516 = vmul.f32 %v1478, 1.442695
        %v1517 = vpow.pop %v1516
        %v1518 = vmul.f32 %v1479, 1.442695
        %v1519 = vpow.pop %v1518
        %v1520 = vmul.f32 %v1480, 1.442695
        %v1521 = vpow.pop %v1520
        %v1522 = vmul.f32 %v1481, 1.442695
        %v1523 = vpow.pop %v1522
        %v1524 = vmul.f32 %v1482, 1.442695
        %v1525 = vpow.pop %v1524
        %v1526 = vmul.f32 %v1483, 1.442695
        %v1527 = vpow.pop %v1526
        %v1528 = vmul.f32 %v1484, 1.442695
        %v1529 = vpow.pop %v1528
        %v1530 = vmul.f32 %v1485, 1.442695
        %v1531 = vpow.pop %v1530
        %v1532 = vmul.f32 %v1486, 1.442695
        %v1533 = vpow.pop %v1532
        %v1534 = vmul.f32 %v1487, 1.442695
        %v1535 = vpow.pop %v1534
        %v1536 = vmul.f32 %v1488, 1.442695
        %v1537 = vpow.pop %v1536
        %v1538 = vmul.f32 %v1489, 1.442695
        %v1539 = vpow.pop %v1538
        %v1540 = vmul.f32 %v1490, 1.442695
        %v1541 = vpow.pop %v1540
        %v1542 = vmul.f32 %v1491, 1.442695
        %v1543 = vpow.pop %v1542
        %v1544 = vmul.f32 %v1492, 1.442695
        %v1545 = vpow.pop %v1544
        %v1546 = vmul.f32 %v1493, 1.442695
        %v1547 = vpow.pop %v1546
        %v1548 = vmul.f32 %v1494, 1.442695
        %v1549 = vpow.pop %v1548
        %v1550 = vmul.f32 %v1495, 1.442695
        %v1551 = vpow.pop %v1550
        %v1552 = vmul.f32 %v1496, 1.442695
        %v1553 = vpow.pop %v1552
        %v1554 = vmul.f32 %v1497, 1.442695
        %v1555 = vpow.pop %v1554
        %v1556 = vmul.f32 %v1498, 1.442695
        %v1557 = vpow.pop %v1556
        %v1558 = vmul.f32 %v1499, 1.442695
        %v1559 = vpow.pop %v1558
        %v1560 = vmul.f32 %v1500, 1.442695
        %v1561 = vpow.pop %v1560
        %v1562 = vmul.f32 %v1501, 1.442695
        %v1563 = vpow.pop %v1562
        %v1564 = vmul.f32 %v1502, 1.442695
        %v1565 = vpow.pop %v1564
        %v1566 = vmul.f32 %v1503, 1.442695
        %v1567 = vpow.pop %v1566
        %v1568 = vmul.f32 %v1505, %v1376
        %v1569 = vmul.f32 %v1507, %v1377
        %v1570 = vmul.f32 %v1509, %v1378
        %v1571 = vmul.f32 %v1511, %v1379
        %v1572 = vmul.f32 %v1513, %v1380
        %v1573 = vmul.f32 %v1515, %v1381
        %v1574 = vmul.f32 %v1517, %v1382
        %v1575 = vmul.f32 %v1519, %v1383
        %v1576 = vmul.f32 %v1521, %v1384
        %v1577 = vmul.f32 %v1523, %v1385
        %v1578 = vmul.f32 %v1525, %v1386
        %v1579 = vmul.f32 %v1527, %v1387
        %v1580 = vmul.f32 %v1529, %v1388
        %v1581 = vmul.f32 %v1531, %v1389
        %v1582 = vmul.f32 %v1533, %v1390
        %v1583 = vmul.f32 %v1535, %v1391
        %v1584 = vmul.f32 %v1537, %v1392
        %v1585 = vmul.f32 %v1539, %v1393
        %v1586 = vmul.f32 %v1541, %v1394
        %v1587 = vmul.f32 %v1543, %v1395
        %v1588 = vmul.f32 %v1545, %v1396
        %v1589 = vmul.f32 %v1547, %v1397
        %v1590 = vmul.f32 %v1549, %v1398
        %v1591 = vmul.f32 %v1551, %v1399
        %v1592 = vmul.f32 %v1553, %v1400
        %v1593 = vmul.f32 %v1555, %v1401
        %v1594 = vmul.f32 %v1557, %v1402
        %v1595 = vmul.f32 %v1559, %v1403
        %v1596 = vmul.f32 %v1561, %v1404
        %v1597 = vmul.f32 %v1563, %v1405
        %v1598 = vmul.f32 %v1565, %v1406
        %v1599 = vmul.f32 %v1567, %v1407
        %v1600 = vld [vmem:[#allocation5] sm:$0xff]
        %v1601 = vld [vmem:[#allocation5 + $0x8] sm:$0xff]
        %v1602 = vld [vmem:[#allocation5 + $0x10] sm:$0xff]
        %v1603 = vld [vmem:[#allocation5 + $0x18] sm:$0xff]
        %v1604 = vld [vmem:[#allocation5 + $0x20] sm:$0xff]
        %v1605 = vld [vmem:[#allocation5 + $0x28] sm:$0xff]
        %v1606 = vld [vmem:[#allocation5 + $0x30] sm:$0xff]
        %v1607 = vld [vmem:[#allocation5 + $0x38] sm:$0xff]
        %v1608 = vld [vmem:[#allocation5 + $0x40] sm:$0xff]
        %v1609 = vld [vmem:[#allocation5 + $0x48] sm:$0xff]
        %v1610 = vld [vmem:[#allocation5 + $0x50] sm:$0xff]
        %v1611 = vld [vmem:[#allocation5 + $0x58] sm:$0xff]
        %v1612 = vld [vmem:[#allocation5 + $0x60] sm:$0xff]
        %v1613 = vld [vmem:[#allocation5 + $0x68] sm:$0xff]
        %v1614 = vld [vmem:[#allocation5 + $0x70] sm:$0xff]
        %v1615 = vld [vmem:[#allocation5 + $0x78] sm:$0xff]
        %v1616 = vadd.f32 %v1568, %v1569
        %1617 = vadd.xlane.f32.xlu0 %v1616
        %v1618 = vpop.xlane.xlu0 %1617
        %v1619 = vadd.f32 %v1570, %v1571
        %1620 = vadd.xlane.f32.xlu0 %v1619
        %v1621 = vpop.xlane.xlu0 %1620
        %v1622 = vadd.f32 %v1572, %v1573
        %1623 = vadd.xlane.f32.xlu0 %v1622
        %v1624 = vpop.xlane.xlu0 %1623
        %v1625 = vadd.f32 %v1574, %v1575
        %1626 = vadd.xlane.f32.xlu0 %v1625
        %v1627 = vpop.xlane.xlu0 %1626
        %v1628 = vadd.f32 %v1576, %v1577
        %1629 = vadd.xlane.f32.xlu0 %v1628
        %v1630 = vpop.xlane.xlu0 %1629
        %v1631 = vadd.f32 %v1578, %v1579
        %1632 = vadd.xlane.f32.xlu0 %v1631
        %v1633 = vpop.xlane.xlu0 %1632
        %v1634 = vadd.f32 %v1580, %v1581
        %1635 = vadd.xlane.f32.xlu0 %v1634
        %v1636 = vpop.xlane.xlu0 %1635
        %v1637 = vadd.f32 %v1582, %v1583
        %1638 = vadd.xlane.f32.xlu0 %v1637
        %v1639 = vpop.xlane.xlu0 %1638
        %v1640 = vadd.f32 %v1584, %v1585
        %1641 = vadd.xlane.f32.xlu0 %v1640
        %v1642 = vpop.xlane.xlu0 %1641
        %v1643 = vadd.f32 %v1586, %v1587
        %1644 = vadd.xlane.f32.xlu0 %v1643
        %v1645 = vpop.xlane.xlu0 %1644
        %v1646 = vadd.f32 %v1588, %v1589
        %1647 = vadd.xlane.f32.xlu0 %v1646
        %v1648 = vpop.xlane.xlu0 %1647
        %v1649 = vadd.f32 %v1590, %v1591
        %1650 = vadd.xlane.f32.xlu0 %v1649
        %v1651 = vpop.xlane.xlu0 %1650
        %v1652 = vadd.f32 %v1592, %v1593
        %1653 = vadd.xlane.f32.xlu0 %v1652
        %v1654 = vpop.xlane.xlu0 %1653
        %v1655 = vadd.f32 %v1594, %v1595
        %1656 = vadd.xlane.f32.xlu0 %v1655
        %v1657 = vpop.xlane.xlu0 %1656
        %v1658 = vadd.f32 %v1596, %v1597
        %1659 = vadd.xlane.f32.xlu0 %v1658
        %v1660 = vpop.xlane.xlu0 %1659
        %v1661 = vadd.f32 %v1598, %v1599
        %1662 = vadd.xlane.f32.xlu0 %v1661
        %v1663 = vpop.xlane.xlu0 %1662
        %v1664 = vadd.f32 %v1600, %v1618
        %v1665 = vadd.f32 %v1601, %v1621
        %v1666 = vadd.f32 %v1602, %v1624
        %v1667 = vadd.f32 %v1603, %v1627
        %v1668 = vadd.f32 %v1604, %v1630
        %v1669 = vadd.f32 %v1605, %v1633
        %v1670 = vadd.f32 %v1606, %v1636
        %v1671 = vadd.f32 %v1607, %v1639
        %v1672 = vadd.f32 %v1608, %v1642
        %v1673 = vadd.f32 %v1609, %v1645
        %v1674 = vadd.f32 %v1610, %v1648
        %v1675 = vadd.f32 %v1611, %v1651
        %v1676 = vadd.f32 %v1612, %v1654
        %v1677 = vadd.f32 %v1613, %v1657
        %v1678 = vadd.f32 %v1614, %v1660
        %v1679 = vadd.f32 %v1615, %v1663
        %vm1680 = vcmask 7168
        %1681 = vst.msk [vmem:[#allocation5] sm:$0xff] %vm1680, %v1664
        %1682 = vst.msk [vmem:[#allocation5 + $0x8] sm:$0xff] %vm1680, %v1665
        %1683 = vst.msk [vmem:[#allocation5 + $0x10] sm:$0xff] %vm1680, %v1666
        %1684 = vst.msk [vmem:[#allocation5 + $0x18] sm:$0xff] %vm1680, %v1667
        %1685 = vst.msk [vmem:[#allocation5 + $0x20] sm:$0xff] %vm1680, %v1668
        %1686 = vst.msk [vmem:[#allocation5 + $0x28] sm:$0xff] %vm1680, %v1669
        %1687 = vst.msk [vmem:[#allocation5 + $0x30] sm:$0xff] %vm1680, %v1670
        %1688 = vst.msk [vmem:[#allocation5 + $0x38] sm:$0xff] %vm1680, %v1671
        %1689 = vst.msk [vmem:[#allocation5 + $0x40] sm:$0xff] %vm1680, %v1672
        %1690 = vst.msk [vmem:[#allocation5 + $0x48] sm:$0xff] %vm1680, %v1673
        %1691 = vst.msk [vmem:[#allocation5 + $0x50] sm:$0xff] %vm1680, %v1674
        %1692 = vst.msk [vmem:[#allocation5 + $0x58] sm:$0xff] %vm1680, %v1675
        %1693 = vst.msk [vmem:[#allocation5 + $0x60] sm:$0xff] %vm1680, %v1676
        %1694 = vst.msk [vmem:[#allocation5 + $0x68] sm:$0xff] %vm1680, %v1677
        %1695 = vst.msk [vmem:[#allocation5 + $0x70] sm:$0xff] %vm1680, %v1678
        %1696 = vst.msk [vmem:[#allocation5 + $0x78] sm:$0xff] %vm1680, %v1679
        %v1697 = vld [vmem:[%s270] sm:$0xff]
        %v1698 = vld [vmem:[%s270 + $0x8] sm:$0xff]
        %v1699 = vld [vmem:[%s270 + $0x10] sm:$0xff]
        %v1700 = vld [vmem:[%s270 + $0x18] sm:$0xff]
        %v1701 = vld [vmem:[%s270 + $0x20] sm:$0xff]
        %v1702 = vld [vmem:[%s270 + $0x28] sm:$0xff]
        %v1703 = vld [vmem:[%s270 + $0x30] sm:$0xff]
        %v1704 = vld [vmem:[%s270 + $0x38] sm:$0xff]
        %v1705 = vld [vmem:[%s270 + $0x40] sm:$0xff]
        %v1706 = vld [vmem:[%s270 + $0x48] sm:$0xff]
        %v1707 = vld [vmem:[%s270 + $0x50] sm:$0xff]
        %v1708 = vld [vmem:[%s270 + $0x58] sm:$0xff]
        %v1709 = vld [vmem:[%s270 + $0x60] sm:$0xff]
        %v1710 = vld [vmem:[%s270 + $0x68] sm:$0xff]
        %v1711 = vld [vmem:[%s270 + $0x70] sm:$0xff]
        %v1712 = vld [vmem:[%s270 + $0x78] sm:$0xff]
        %v1713 = vpack.c.bf16 %v1570, %v1568
        %v1714 = vpack.c.bf16 %v1571, %v1569
        %v1715 = vpack.c.bf16 %v1574, %v1572
        %v1716 = vpack.c.bf16 %v1575, %v1573
        %v1717 = vpack.c.bf16 %v1578, %v1576
        %v1718 = vpack.c.bf16 %v1579, %v1577
        %v1719 = vpack.c.bf16 %v1582, %v1580
        %v1720 = vpack.c.bf16 %v1583, %v1581
        %v1721 = vpack.c.bf16 %v1586, %v1584
        %v1722 = vpack.c.bf16 %v1587, %v1585
        %v1723 = vpack.c.bf16 %v1590, %v1588
        %v1724 = vpack.c.bf16 %v1591, %v1589
        %v1725 = vpack.c.bf16 %v1594, %v1592
        %v1726 = vpack.c.bf16 %v1595, %v1593
        %v1727 = vpack.c.bf16 %v1598, %v1596
        %v1728 = vpack.c.bf16 %v1599, %v1597
        %v1761 = vunpack.c.l.b16 %v1181
        %v1762 = vunpack.c.l.b16 %v1182
        %v1763 = vunpack.c.l.b16 %v1183
        %v1764 = vunpack.c.l.b16 %v1184
        %v1765 = vunpack.c.l.b16 %v1185
        %v1766 = vunpack.c.l.b16 %v1186
        %v1767 = vunpack.c.l.b16 %v1187
        %v1768 = vunpack.c.l.b16 %v1188
        %v1769 = vunpack.c.l.b16 %v1189
        %v1770 = vunpack.c.l.b16 %v1190
        %v1771 = vunpack.c.l.b16 %v1191
        %v1772 = vunpack.c.l.b16 %v1192
        %v1773 = vunpack.c.l.b16 %v1193
        %v1774 = vunpack.c.l.b16 %v1194
        %v1775 = vunpack.c.l.b16 %v1195
        %v1776 = vunpack.c.l.b16 %v1196
        %v1777 = vunpack.c.l.b16 %v1197
        %v1778 = vunpack.c.l.b16 %v1198
        %v1779 = vunpack.c.l.b16 %v1199
        %v1780 = vunpack.c.l.b16 %v1200
        %v1781 = vunpack.c.l.b16 %v1201
        %v1782 = vunpack.c.l.b16 %v1202
        %v1783 = vunpack.c.l.b16 %v1203
        %v1784 = vunpack.c.l.b16 %v1204
        %v1785 = vunpack.c.l.b16 %v1205
        %v1786 = vunpack.c.l.b16 %v1206
        %v1787 = vunpack.c.l.b16 %v1207
        %v1788 = vunpack.c.l.b16 %v1208
        %v1789 = vunpack.c.l.b16 %v1209
        %v1790 = vunpack.c.l.b16 %v1210
        %v1791 = vunpack.c.l.b16 %v1211
        %v1792 = vunpack.c.l.b16 %v1212
        %v1793 = vpack.c.b16 %v1762, %v1761
        %v1794 = vpack.c.b16 %v1764, %v1763
        %v1795 = vpack.c.b16 %v1766, %v1765
        %v1796 = vpack.c.b16 %v1768, %v1767
        %v1797 = vpack.c.b16 %v1770, %v1769
        %v1798 = vpack.c.b16 %v1772, %v1771
        %v1799 = vpack.c.b16 %v1774, %v1773
        %v1800 = vpack.c.b16 %v1776, %v1775
        %v1801 = vpack.c.b16 %v1778, %v1777
        %v1802 = vpack.c.b16 %v1780, %v1779
        %v1803 = vpack.c.b16 %v1782, %v1781
        %v1804 = vpack.c.b16 %v1784, %v1783
        %v1805 = vpack.c.b16 %v1786, %v1785
        %v1806 = vpack.c.b16 %v1788, %v1787
        %v1807 = vpack.c.b16 %v1790, %v1789
        %v1808 = vpack.c.b16 %v1792, %v1791
        %1825 = vmatprep.subr.bf16.mxu0 0
        %1826 = vmatpush1.bf16.msra.mxu0 %v1800
        %1827 = vmatprep.subr.bf16.mxu0 0
        %1828 = vmatpush1.bf16.msra.mxu0 %v1799
        %1829 = vmatprep.subr.bf16.mxu0 0
        %1830 = vmatpush1.bf16.msra.mxu0 %v1798
        %1831 = vmatprep.subr.bf16.mxu0 0
        %1832 = vmatpush1.bf16.msra.mxu0 %v1797
        %1833 = vmatprep.subr.bf16.mxu0 0
        %1834 = vmatpush1.bf16.msra.mxu0 %v1796
        %1835 = vmatprep.subr.bf16.mxu0 0
        %1836 = vmatpush1.bf16.msra.mxu0 %v1795
        %1837 = vmatprep.subr.bf16.mxu0 0
        %1838 = vmatpush1.bf16.msra.mxu0 %v1794
        %1839 = vmatprep.subr.bf16.mxu0 0
        %1840 = vmatpush1.bf16.msra.mxu0 %v1793
        %1841 = vmatprep.subr.bf16.mxu0 0
        %1842 = vmatpush2.bf16.msra.mxu0 %v1808
        %1843 = vmatprep.subr.bf16.mxu0 0
        %1844 = vmatpush2.bf16.msra.mxu0 %v1807
        %1845 = vmatprep.subr.bf16.mxu0 0
        %1846 = vmatpush2.bf16.msra.mxu0 %v1806
        %1847 = vmatprep.subr.bf16.mxu0 0
        %1848 = vmatpush2.bf16.msra.mxu0 %v1805
        %1849 = vmatprep.subr.bf16.mxu0 0
        %1850 = vmatpush2.bf16.msra.mxu0 %v1804
        %1851 = vmatprep.subr.bf16.mxu0 0
        %1852 = vmatpush2.bf16.msra.mxu0 %v1803
        %1853 = vmatprep.subr.bf16.mxu0 0
        %1854 = vmatpush2.bf16.msra.mxu0 %v1802
        %1855 = vmatprep.subr.bf16.mxu0 0
        %1856 = vmatpush2.bf16.msra.mxu0 %v1801
        %1857 = vmatprep.mubr.bf16.mxu0 %v1714
        %1858 = vmatmul.mubr.bf16.gmra.mxu0 %v1713
        %v1859 = vpop.f32.mrf.mxu0
        %v1860 = vadd.f32 0.0, %v1859
        %v1861 = vpop.f32.mrf.mxu0
        %v1862 = vpop.f32.mrf.mxu0
        %v1863 = vadd.f32 0.0, %v1862
        %v1864 = vpop.f32.mrf.mxu0
        %1865 = vmatprep.mubr.bf16.mxu0 %v1716
        %1866 = vmatmul.mubr.bf16.gmra.mxu0 %v1715
        %v1867 = vpop.f32.mrf.mxu0
        %v1868 = vadd.f32 0.0, %v1867
        %v1869 = vpop.f32.mrf.mxu0
        %v1870 = vpop.f32.mrf.mxu0
        %v1871 = vadd.f32 0.0, %v1870
        %v1872 = vpop.f32.mrf.mxu0
        %1873 = vmatprep.mubr.bf16.mxu0 %v1718
        %1874 = vmatmul.mubr.bf16.gmra.mxu0 %v1717
        %v1875 = vpop.f32.mrf.mxu0
        %v1876 = vadd.f32 0.0, %v1875
        %v1877 = vpop.f32.mrf.mxu0
        %v1878 = vpop.f32.mrf.mxu0
        %v1879 = vadd.f32 0.0, %v1878
        %v1880 = vpop.f32.mrf.mxu0
        %1881 = vmatprep.mubr.bf16.mxu0 %v1720
        %1882 = vmatmul.mubr.bf16.gmra.mxu0 %v1719
        %v1883 = vpop.f32.mrf.mxu0
        %v1884 = vadd.f32 0.0, %v1883
        %v1885 = vpop.f32.mrf.mxu0
        %v1886 = vpop.f32.mrf.mxu0
        %v1887 = vadd.f32 0.0, %v1886
        %v1888 = vpop.f32.mrf.mxu0
        %1889 = vmatprep.mubr.bf16.mxu0 %v1722
        %1890 = vmatmul.mubr.bf16.gmra.mxu0 %v1721
        %v1891 = vpop.f32.mrf.mxu0
        %v1892 = vadd.f32 0.0, %v1891
        %v1893 = vpop.f32.mrf.mxu0
        %v1894 = vpop.f32.mrf.mxu0
        %v1895 = vadd.f32 0.0, %v1894
        %v1896 = vpop.f32.mrf.mxu0
        %1897 = vmatprep.mubr.bf16.mxu0 %v1724
        %1898 = vmatmul.mubr.bf16.gmra.mxu0 %v1723
        %v1899 = vpop.f32.mrf.mxu0
        %v1900 = vadd.f32 0.0, %v1899
        %v1901 = vpop.f32.mrf.mxu0
        %v1902 = vpop.f32.mrf.mxu0
        %v1903 = vadd.f32 0.0, %v1902
        %v1904 = vpop.f32.mrf.mxu0
        %1905 = vmatprep.mubr.bf16.mxu0 %v1726
        %1906 = vmatmul.mubr.bf16.gmra.mxu0 %v1725
        %v1907 = vpop.f32.mrf.mxu0
        %v1908 = vadd.f32 0.0, %v1907
        %v1909 = vpop.f32.mrf.mxu0
        %v1910 = vpop.f32.mrf.mxu0
        %v1911 = vadd.f32 0.0, %v1910
        %v1912 = vpop.f32.mrf.mxu0
        %1913 = vmatprep.mubr.bf16.mxu0 %v1728
        %1914 = vmatmul.mubr.bf16.gmra.mxu0 %v1727
        %v1915 = vpop.f32.mrf.mxu0
        %v1916 = vadd.f32 0.0, %v1915
        %v1917 = vpop.f32.mrf.mxu0
        %v1918 = vpop.f32.mrf.mxu0
        %v1919 = vadd.f32 0.0, %v1918
        %v1920 = vpop.f32.mrf.mxu0
        %1921 = vdwg.mxu0
        %v1922 = vadd.f32 %v1697, %v1860
        %v1923 = vadd.f32 %v1698, %v1863
        %v1924 = vadd.f32 %v1699, %v1868
        %v1925 = vadd.f32 %v1700, %v1871
        %v1926 = vadd.f32 %v1701, %v1876
        %v1927 = vadd.f32 %v1702, %v1879
        %v1928 = vadd.f32 %v1703, %v1884
        %v1929 = vadd.f32 %v1704, %v1887
        %v1930 = vadd.f32 %v1705, %v1892
        %v1931 = vadd.f32 %v1706, %v1895
        %v1932 = vadd.f32 %v1707, %v1900
        %v1933 = vadd.f32 %v1708, %v1903
        %v1934 = vadd.f32 %v1709, %v1908
        %v1935 = vadd.f32 %v1710, %v1911
        %v1936 = vadd.f32 %v1711, %v1916
        %v1937 = vadd.f32 %v1712, %v1919
        %1938 = vst [vmem:[%s270] sm:$0xff] %v1922
        %1939 = vst [vmem:[%s270 + $0x8] sm:$0xff] %v1923
        %1940 = vst [vmem:[%s270 + $0x10] sm:$0xff] %v1924
        %1941 = vst [vmem:[%s270 + $0x18] sm:$0xff] %v1925
        %1942 = vst [vmem:[%s270 + $0x20] sm:$0xff] %v1926
        %1943 = vst [vmem:[%s270 + $0x28] sm:$0xff] %v1927
        %1944 = vst [vmem:[%s270 + $0x30] sm:$0xff] %v1928
        %1945 = vst [vmem:[%s270 + $0x38] sm:$0xff] %v1929
        %1946 = vst [vmem:[%s270 + $0x40] sm:$0xff] %v1930
        %1947 = vst [vmem:[%s270 + $0x48] sm:$0xff] %v1931
        %1948 = vst [vmem:[%s270 + $0x50] sm:$0xff] %v1932
        %1949 = vst [vmem:[%s270 + $0x58] sm:$0xff] %v1933
        %1950 = vst [vmem:[%s270 + $0x60] sm:$0xff] %v1934
        %1951 = vst [vmem:[%s270 + $0x68] sm:$0xff] %v1935
        %1952 = vst [vmem:[%s270 + $0x70] sm:$0xff] %v1936
        %1953 = vst [vmem:[%s270 + $0x78] sm:$0xff] %v1937
        // Predicated region
        $region49: #{tpu_custom_call.1} parent=43 // pred_check
          %p1954 = pneg %p285
        $region50: #{tpu_custom_call.1} parent=43 // pred_check_branch
          %1956 = sbr.rel (%p1954) target = $region52
        $region51: #{tpu_custom_call.1} parent=43 // pred_region
          %v1957 = vld [vmem:[#allocation5] sm:$0xff]
          %v1958 = vld [vmem:[#allocation5 + $0x8] sm:$0xff]
          %v1959 = vld [vmem:[#allocation5 + $0x10] sm:$0xff]
          %v1960 = vld [vmem:[#allocation5 + $0x18] sm:$0xff]
          %v1961 = vld [vmem:[#allocation5 + $0x20] sm:$0xff]
          %v1962 = vld [vmem:[#allocation5 + $0x28] sm:$0xff]
          %v1963 = vld [vmem:[#allocation5 + $0x30] sm:$0xff]
          %v1964 = vld [vmem:[#allocation5 + $0x38] sm:$0xff]
          %v1965 = vld [vmem:[#allocation5 + $0x40] sm:$0xff]
          %v1966 = vld [vmem:[#allocation5 + $0x48] sm:$0xff]
          %v1967 = vld [vmem:[#allocation5 + $0x50] sm:$0xff]
          %v1968 = vld [vmem:[#allocation5 + $0x58] sm:$0xff]
          %v1969 = vld [vmem:[#allocation5 + $0x60] sm:$0xff]
          %v1970 = vld [vmem:[#allocation5 + $0x68] sm:$0xff]
          %v1971 = vld [vmem:[#allocation5 + $0x70] sm:$0xff]
          %v1972 = vld [vmem:[#allocation5 + $0x78] sm:$0xff]
          %v1973 = vmax.f32 %v1957, 1e-30
          %v1974 = vmax.f32 %v1958, 1e-30
          %v1975 = vmax.f32 %v1959, 1e-30
          %v1976 = vmax.f32 %v1960, 1e-30
          %v1977 = vmax.f32 %v1961, 1e-30
          %v1978 = vmax.f32 %v1962, 1e-30
          %v1979 = vmax.f32 %v1963, 1e-30
          %v1980 = vmax.f32 %v1964, 1e-30
          %v1981 = vmax.f32 %v1965, 1e-30
          %v1982 = vmax.f32 %v1966, 1e-30
          %v1983 = vmax.f32 %v1967, 1e-30
          %v1984 = vmax.f32 %v1968, 1e-30
          %v1985 = vmax.f32 %v1969, 1e-30
          %v1986 = vmax.f32 %v1970, 1e-30
          %v1987 = vmax.f32 %v1971, 1e-30
          %v1988 = vmax.f32 %v1972, 1e-30
          %v1989 = vrcp.pop %v1973
          %v1990 = vrcp.pop %v1974
          %v1991 = vrcp.pop %v1975
          %v1992 = vrcp.pop %v1976
          %v1993 = vrcp.pop %v1977
          %v1994 = vrcp.pop %v1978
          %v1995 = vrcp.pop %v1979
          %v1996 = vrcp.pop %v1980
          %v1997 = vrcp.pop %v1981
          %v1998 = vrcp.pop %v1982
          %v1999 = vrcp.pop %v1983
          %v2000 = vrcp.pop %v1984
          %v2001 = vrcp.pop %v1985
          %v2002 = vrcp.pop %v1986
          %v2003 = vrcp.pop %v1987
          %v2004 = vrcp.pop %v1988
          %v2005 = vld [vmem:[%s270] sm:$0xff]
          %v2006 = vld [vmem:[%s270 + $0x8] sm:$0xff]
          %v2007 = vld [vmem:[%s270 + $0x10] sm:$0xff]
          %v2008 = vld [vmem:[%s270 + $0x18] sm:$0xff]
          %v2009 = vld [vmem:[%s270 + $0x20] sm:$0xff]
          %v2010 = vld [vmem:[%s270 + $0x28] sm:$0xff]
          %v2011 = vld [vmem:[%s270 + $0x30] sm:$0xff]
          %v2012 = vld [vmem:[%s270 + $0x38] sm:$0xff]
          %v2013 = vld [vmem:[%s270 + $0x40] sm:$0xff]
          %v2014 = vld [vmem:[%s270 + $0x48] sm:$0xff]
          %v2015 = vld [vmem:[%s270 + $0x50] sm:$0xff]
          %v2016 = vld [vmem:[%s270 + $0x58] sm:$0xff]
          %v2017 = vld [vmem:[%s270 + $0x60] sm:$0xff]
          %v2018 = vld [vmem:[%s270 + $0x68] sm:$0xff]
          %v2019 = vld [vmem:[%s270 + $0x70] sm:$0xff]
          %v2020 = vld [vmem:[%s270 + $0x78] sm:$0xff]
          %2022 = vset.pattern.permute.xlu0 0
          %2023 = vperm.xlu0 %2022, %v1989
          %v2024 = vpop.permute.xlu0 %2023
          %2027 = vset.pattern.permute.xlu0 0
          %2028 = vperm.xlu0 %2027, %v1990
          %v2029 = vpop.permute.xlu0 %2028
          %2032 = vset.pattern.permute.xlu0 0
          %2033 = vperm.xlu0 %2032, %v1991
          %v2034 = vpop.permute.xlu0 %2033
          %2037 = vset.pattern.permute.xlu0 0
          %2038 = vperm.xlu0 %2037, %v1992
          %v2039 = vpop.permute.xlu0 %2038
          %2042 = vset.pattern.permute.xlu0 0
          %2043 = vperm.xlu0 %2042, %v1993
          %v2044 = vpop.permute.xlu0 %2043
          %2047 = vset.pattern.permute.xlu0 0
          %2048 = vperm.xlu0 %2047, %v1994
          %v2049 = vpop.permute.xlu0 %2048
          %2052 = vset.pattern.permute.xlu0 0
          %2053 = vperm.xlu0 %2052, %v1995
          %v2054 = vpop.permute.xlu0 %2053
          %2057 = vset.pattern.permute.xlu0 0
          %2058 = vperm.xlu0 %2057, %v1996
          %v2059 = vpop.permute.xlu0 %2058
          %2062 = vset.pattern.permute.xlu0 0
          %2063 = vperm.xlu0 %2062, %v1997
          %v2064 = vpop.permute.xlu0 %2063
          %2067 = vset.pattern.permute.xlu0 0
          %2068 = vperm.xlu0 %2067, %v1998
          %v2069 = vpop.permute.xlu0 %2068
          %2072 = vset.pattern.permute.xlu0 0
          %2073 = vperm.xlu0 %2072, %v1999
          %v2074 = vpop.permute.xlu0 %2073
          %2077 = vset.pattern.permute.xlu0 0
          %2078 = vperm.xlu0 %2077, %v2000
          %v2079 = vpop.permute.xlu0 %2078
          %2082 = vset.pattern.permute.xlu0 0
          %2083 = vperm.xlu0 %2082, %v2001
          %v2084 = vpop.permute.xlu0 %2083
          %2087 = vset.pattern.permute.xlu0 0
          %2088 = vperm.xlu0 %2087, %v2002
          %v2089 = vpop.permute.xlu0 %2088
          %2092 = vset.pattern.permute.xlu0 0
          %2093 = vperm.xlu0 %2092, %v2003
          %v2094 = vpop.permute.xlu0 %2093
          %2097 = vset.pattern.permute.xlu0 0
          %2098 = vperm.xlu0 %2097, %v2004
          %v2099 = vpop.permute.xlu0 %2098
          %v2101 = vmul.f32 %v2005, %v2024
          %v2102 = vmul.f32 %v2006, %v2029
          %v2103 = vmul.f32 %v2007, %v2034
          %v2104 = vmul.f32 %v2008, %v2039
          %v2105 = vmul.f32 %v2009, %v2044
          %v2106 = vmul.f32 %v2010, %v2049
          %v2107 = vmul.f32 %v2011, %v2054
          %v2108 = vmul.f32 %v2012, %v2059
          %v2109 = vmul.f32 %v2013, %v2064
          %v2110 = vmul.f32 %v2014, %v2069
          %v2111 = vmul.f32 %v2015, %v2074
          %v2112 = vmul.f32 %v2016, %v2079
          %v2113 = vmul.f32 %v2017, %v2084
          %v2114 = vmul.f32 %v2018, %v2089
          %v2115 = vmul.f32 %v2019, %v2094
          %v2116 = vmul.f32 %v2020, %v2099
          %vm2117 = vcmp.gt.f32.partialorder %v2101, 0.0
          %vm2118 = vcmp.gt.f32.partialorder %v2102, 0.0
          %vm2119 = vcmp.gt.f32.partialorder %v2103, 0.0
          %vm2120 = vcmp.gt.f32.partialorder %v2104, 0.0
          %vm2121 = vcmp.gt.f32.partialorder %v2105, 0.0
          %vm2122 = vcmp.gt.f32.partialorder %v2106, 0.0
          %vm2123 = vcmp.gt.f32.partialorder %v2107, 0.0
          %vm2124 = vcmp.gt.f32.partialorder %v2108, 0.0
          %vm2125 = vcmp.gt.f32.partialorder %v2109, 0.0
          %vm2126 = vcmp.gt.f32.partialorder %v2110, 0.0
          %vm2127 = vcmp.gt.f32.partialorder %v2111, 0.0
          %vm2128 = vcmp.gt.f32.partialorder %v2112, 0.0
          %vm2129 = vcmp.gt.f32.partialorder %v2113, 0.0
          %vm2130 = vcmp.gt.f32.partialorder %v2114, 0.0
          %vm2131 = vcmp.gt.f32.partialorder %v2115, 0.0
          %vm2132 = vcmp.gt.f32.partialorder %v2116, 0.0
          %v2133 = vmul.f32 %v2101, 1.442695
          %v2134 = vpow.pop %v2133
          %v2135 = vmul.f32 %v2102, 1.442695
          %v2136 = vpow.pop %v2135
          %v2137 = vmul.f32 %v2103, 1.442695
          %v2138 = vpow.pop %v2137
          %v2139 = vmul.f32 %v2104, 1.442695
          %v2140 = vpow.pop %v2139
          %v2141 = vmul.f32 %v2105, 1.442695
          %v2142 = vpow.pop %v2141
          %v2143 = vmul.f32 %v2106, 1.442695
          %v2144 = vpow.pop %v2143
          %v2145 = vmul.f32 %v2107, 1.442695
          %v2146 = vpow.pop %v2145
          %v2147 = vmul.f32 %v2108, 1.442695
          %v2148 = vpow.pop %v2147
          %v2149 = vmul.f32 %v2109, 1.442695
          %v2150 = vpow.pop %v2149
          %v2151 = vmul.f32 %v2110, 1.442695
          %v2152 = vpow.pop %v2151
          %v2153 = vmul.f32 %v2111, 1.442695
          %v2154 = vpow.pop %v2153
          %v2155 = vmul.f32 %v2112, 1.442695
          %v2156 = vpow.pop %v2155
          %v2157 = vmul.f32 %v2113, 1.442695
          %v2158 = vpow.pop %v2157
          %v2159 = vmul.f32 %v2114, 1.442695
          %v2160 = vpow.pop %v2159
          %v2161 = vmul.f32 %v2115, 1.442695
          %v2162 = vpow.pop %v2161
          %v2163 = vmul.f32 %v2116, 1.442695
          %v2164 = vpow.pop %v2163
          %v2165 = vsub.f32 %v2134, 1.0
          %v2166 = vsub.f32 %v2136, 1.0
          %v2167 = vsub.f32 %v2138, 1.0
          %v2168 = vsub.f32 %v2140, 1.0
          %v2169 = vsub.f32 %v2142, 1.0
          %v2170 = vsub.f32 %v2144, 1.0
          %v2171 = vsub.f32 %v2146, 1.0
          %v2172 = vsub.f32 %v2148, 1.0
          %v2173 = vsub.f32 %v2150, 1.0
          %v2174 = vsub.f32 %v2152, 1.0
          %v2175 = vsub.f32 %v2154, 1.0
          %v2176 = vsub.f32 %v2156, 1.0
          %v2177 = vsub.f32 %v2158, 1.0
          %v2178 = vsub.f32 %v2160, 1.0
          %v2179 = vsub.f32 %v2162, 1.0
          %v2180 = vsub.f32 %v2164, 1.0
          %v2181 = vsel %vm2117, %v2101, %v2165
          %v2182 = vsel %vm2118, %v2102, %v2166
          %v2183 = vsel %vm2119, %v2103, %v2167
          %v2184 = vsel %vm2120, %v2104, %v2168
          %v2185 = vsel %vm2121, %v2105, %v2169
          %v2186 = vsel %vm2122, %v2106, %v2170
          %v2187 = vsel %vm2123, %v2107, %v2171
          %v2188 = vsel %vm2124, %v2108, %v2172
          %v2189 = vsel %vm2125, %v2109, %v2173
          %v2190 = vsel %vm2126, %v2110, %v2174
          %v2191 = vsel %vm2127, %v2111, %v2175
          %v2192 = vsel %vm2128, %v2112, %v2176
          %v2193 = vsel %vm2129, %v2113, %v2177
          %v2194 = vsel %vm2130, %v2114, %v2178
          %v2195 = vsel %vm2131, %v2115, %v2179
          %v2196 = vsel %vm2132, %v2116, %v2180
          %2197 = vst [vmem:[%s270] sm:$0xff] %v2181
          %2198 = vst [vmem:[%s270 + $0x8] sm:$0xff] %v2182
          %2199 = vst [vmem:[%s270 + $0x10] sm:$0xff] %v2183
          %2200 = vst [vmem:[%s270 + $0x18] sm:$0xff] %v2184
          %2201 = vst [vmem:[%s270 + $0x20] sm:$0xff] %v2185
          %2202 = vst [vmem:[%s270 + $0x28] sm:$0xff] %v2186
          %2203 = vst [vmem:[%s270 + $0x30] sm:$0xff] %v2187
          %2204 = vst [vmem:[%s270 + $0x38] sm:$0xff] %v2188
          %2205 = vst [vmem:[%s270 + $0x40] sm:$0xff] %v2189
          %2206 = vst [vmem:[%s270 + $0x48] sm:$0xff] %v2190
          %2207 = vst [vmem:[%s270 + $0x50] sm:$0xff] %v2191
          %2208 = vst [vmem:[%s270 + $0x58] sm:$0xff] %v2192
          %2209 = vst [vmem:[%s270 + $0x60] sm:$0xff] %v2193
          %2210 = vst [vmem:[%s270 + $0x68] sm:$0xff] %v2194
          %2211 = vst [vmem:[%s270 + $0x70] sm:$0xff] %v2195
          %2212 = vst [vmem:[%s270 + $0x78] sm:$0xff] %v2196
        $region52: #{tpu_custom_call.1} parent=43 // pred_fallthru
          _
        %s2213 = sand.u32 %s173, 1
        %s2214 = scalar_lea.sflag [#allocation7], %s2213
        %s2215 = sand.u32 %s173, 1
        %s2216 = smul.addr %s2215, 128
        %s2217 = scalar_lea.vmem [#allocation6], %s2216
        // Predicated region
        $region53: #{tpu_custom_call.1} parent=43 // pred_check
          %p2218 = pneg %p183
        $region54: #{tpu_custom_call.1} parent=43 // pred_check_branch
          %2220 = sbr.rel (%p2218) target = $region56
        $region55: #{tpu_custom_call.1} parent=43 // pred_region
          %s2221 = smul.u32 16, %s24
          %s2223 = ssub.s32 2048, 2048
          %2224 = vsyncadd %s2214, %s2223
          %s2225 = smul.addr %s2221, 128
          %s2226 = scalar_lea.hbm %s6, %s2225
          %s2227 = sshll.u32 %s2217, 4
          %s2228 = int_to_ptr.vmem [resolvable:$true] %s2227
          %2233 = dma.vmem_to_hbm [thread:$0]  %s2228, 2048, %s2226, %s2214, 128, 128, 8
        $region56: #{tpu_custom_call.1} parent=43 // pred_fallthru
          _
      $region44: #{tpu_custom_call.1} parent=5 // pred_fallthru
        _
      %p2234 = scmp.le.s32.totalorder 2, %s15
      // Predicated region
      $region57: #{tpu_custom_call.1} parent=5 // pred_check
        %p2235 = pneg %p2234
      $region58: #{tpu_custom_call.1} parent=5 // pred_check_branch
        %2237 = sbr.rel (%p2235) target = $region60
      $region59: #{tpu_custom_call.1} parent=5 // pred_region
        %s2238 = ssub.s32 %s15, 2
        // Predicated region
        $region61: #{tpu_custom_call.1} parent=59 // pred_check
          %p2239 = pneg %p189
        $region62: #{tpu_custom_call.1} parent=59 // pred_check_branch
          %2241 = sbr.rel (%p2239) target = $region64
        $region63: #{tpu_custom_call.1} parent=59 // pred_region
          %s2242 = sand.u32 %s174, 1
          %s2243 = scalar_lea.sflag [#allocation7], %s2242
          %s2244 = sand.u32 %s174, 1
          %s2245 = smul.addr %s2244, 128
          %s2246 = scalar_lea.vmem [#allocation6], %s2245
          %2247 = dma.done %s2243, 2048
        $region64: #{tpu_custom_call.1} parent=59 // pred_fallthru
          _
      $region60: #{tpu_custom_call.1} parent=5 // pred_fallthru
        _
    $region6: #{tpu_custom_call.1} parent=1 // loop_footer
      %s19 = sadd.s32 1, %s15
    $region7: #{tpu_custom_call.1} parent=1 // loop_footer_branch
      %14 = sbr.rel target = $region3
    $region8: #{tpu_custom_call.1} parent=1 // loop_exit
      _
    %2248 = vsyncpa [#allocation7], 1
    %s2249 = scalar_lea.sflag [#allocation7], 1
    %2250 = vsyncpa %s2249, 1

</llo_original>
